<compile_context>
chip_gen: v5e
topology: v5e:2x2
jax: 0.10.0
libtpu: 0.0.40
codegen_flags: <defaults>
</compile_context>

<pallas_src>
import jax
import jax.numpy as jnp
from jax import lax
from jax.experimental import pallas as pl
from jax.experimental.pallas import tpu as pltpu


def _sage_kernel(src_ref, dst_ref, x_ref, wcat_ref, bl_ref,
                 o_ref, acc_ref, deg_ref):
    i = pl.program_id(0)                       # node tile index
    e = pl.program_id(1)                       # edge tile index (reduction)
    tn, f_in = acc_ref.shape
    n_pad = x_ref.shape[0]
    te = src_ref.shape[1]

    @pl.when(e == 0)
    def _init():
        acc_ref[...] = jnp.zeros_like(acc_ref)
        deg_ref[...] = jnp.zeros_like(deg_ref)

    src = src_ref[...]                         # (1, TE) int32
    # Fold the node-tile offset into dst (one (1,TE) subtract) instead of
    # adding i*tn to the full (TN, TE) iota.
    dst_local = dst_ref[...] - i * tn          # (1, TE) int32

    # dst one-hot for THIS node tile only: S[r, c] = 1 iff dst[c] == i*TN + r.
    rows = lax.broadcasted_iota(jnp.int32, (tn, te), 0)
    s_oh = (rows == dst_local).astype(jnp.bfloat16)          # (TN, TE), exact 0/1

    # src one-hot over all (padded) nodes: G[n, c] = 1 iff src[c] == n.
    all_rows = lax.broadcasted_iota(jnp.int32, (n_pad, te), 0)
    g_oh = (all_rows == src).astype(jnp.bfloat16)             # (N_pad, TE)

    # adj[r, n] = #edges n -> (i*TN + r) within this edge tile.
    # bf16 x bf16 -> f32 accumulate on the MXU; contraction over TE.
    adj = lax.dot_general(s_oh, g_oh, (((1,), (1,)), ((), ())),
                          preferred_element_type=jnp.float32)  # (TN, N_pad)

    # In-degree reuses the MXU output (no extra (TN,TE) cast / reduce).
    deg_ref[...] += jnp.sum(adj, axis=1, keepdims=True)        # (TN, 1)

    # Neighbor feature sums: bf16 operands, f32 accumulation.
    # (adj counts are exact in bf16 while per-(src,dst) multiplicity <= 256
    #  inside one edge tile; te=512 with simple graphs satisfies this.)
    acc_ref[...] += jnp.dot(adj.astype(jnp.bfloat16), x_ref[...],
                            preferred_element_type=jnp.float32)  # (TN, F_in)

    @pl.when(e == pl.num_programs(1) - 1)
    def _finalize():
        deg = deg_ref[...]                                       # (TN, 1)
        # Isolated nodes have acc == 0, so clamping deg to >= 1 keeps mean == 0.
        inv = pl.reciprocal(jnp.maximum(deg, 1.0), approx=True)  # EUP slot
        h = (acc_ref[...] * inv).astype(jnp.bfloat16)            # (TN, F_in)
        start = pl.multiple_of(i * tn, tn)
        x_root = x_ref[pl.ds(start, tn), :]                      # (TN, F_in) bf16
        # Fused epilogue matmul: [h, x_root] @ [W_l^T; W_r^T]  (2*F_in deep).
        hx = jnp.concatenate([h, x_root], axis=1)                # (TN, 2*F_in)
        out = jnp.dot(hx, wcat_ref[...],
                      preferred_element_type=jnp.float32)        # (TN, F_out)
        out = out + bl_ref[...]                                  # (1, F_out) f32
        o_ref[...] = out.astype(o_ref.dtype)


def sageconv_gnnb(x, edge_index, w_l, b_l, w_r, *, tn=128, te=512):
    """PyG SAGEConv forward.

    x:          (N, F_in) float32 node features
    edge_index: (2, E) int; row 0 = source, row 1 = destination
    w_l:        (F_out, F_in)  neighbor weight (lin_l.weight)
    b_l:        (F_out,)       neighbor bias   (lin_l.bias)
    w_r:        (F_out, F_in)  root weight     (lin_r.weight, no bias)
    """
    n, f_in = x.shape
    f_out = w_l.shape[0]
    e = edge_index.shape[1]

    # Ensure at least 2 node tiles so the "parallel" axis can use both
    # TensorCores on v7x (no-op on v5e/v6e, which have a single TC).
    while tn > 64 and pl.cdiv(n, tn) < 2:
        tn //= 2

    n_pad = pl.cdiv(n, tn) * tn
    e_pad = pl.cdiv(e, te) * te

    # Node features resident in VMEM as bf16 (halved footprint + bf16 MXU path).
    x_p = jnp.zeros((n_pad, f_in), jnp.bfloat16).at[:n, :].set(
        x.astype(jnp.bfloat16))
    src = edge_index[0].astype(jnp.int32)
    dst = edge_index[1].astype(jnp.int32)
    # Padded edges get dst = -1 (matches no node row) -> zero contribution.
    src_p = jnp.zeros((1, e_pad), jnp.int32).at[0, :e].set(src)
    dst_p = jnp.full((1, e_pad), -1, jnp.int32).at[0, :e].set(dst)

    # Host-stacked [W_l^T; W_r^T]: single 2*F_in-deep epilogue matmul.
    w_cat = jnp.concatenate(
        [w_l.T.astype(jnp.bfloat16), w_r.T.astype(jnp.bfloat16)], axis=0)
    bl = b_l.reshape(1, f_out).astype(jnp.float32)

    grid = (n_pad // tn, e_pad // te)
    n_t, e_t = grid

    flops = (n_t * e_t * (2 * tn * te * n_pad + 2 * tn * n_pad * f_in)
             + n_t * (2 * tn * (2 * f_in) * f_out))
    bytes_accessed = (x_p.size * 2 + w_cat.size * 2 + bl.size * 4
                      + n_t * 2 * e_pad * 4 + n_pad * f_out * 4)

    # Explicit VMEM budget sized from actual residency (constant inputs are
    # single-buffered, src/dst/out tiles double-buffered) plus headroom.
    resident = (x_p.size * 2 + w_cat.size * 2 + bl.size * 4
                + 2 * 2 * te * 4                  # src + dst tiles, 2 buffers
                + 2 * tn * f_out * 4              # out tile, 2 buffers
                + tn * f_in * 4 + tn * 4)         # acc + deg scratch
    vmem_limit = int(min(2 * resident + (8 << 20), 100 << 20))

    out = pl.pallas_call(
        _sage_kernel,
        out_shape=jax.ShapeDtypeStruct((n_pad, f_out), x.dtype),
        grid_spec=pltpu.PrefetchScalarGridSpec(
            num_scalar_prefetch=0,
            grid=grid,
            in_specs=[
                pl.BlockSpec((1, te), lambda i, k: (0, k)),            # src
                pl.BlockSpec((1, te), lambda i, k: (0, k)),            # dst
                pl.BlockSpec((n_pad, f_in), lambda i, k: (0, 0),       # x (resident)
                             pipeline_mode=pl.Buffered(1)),
                pl.BlockSpec((2 * f_in, f_out), lambda i, k: (0, 0),   # [W_l^T; W_r^T]
                             pipeline_mode=pl.Buffered(1)),
                pl.BlockSpec((1, f_out), lambda i, k: (0, 0),          # b_l
                             pipeline_mode=pl.Buffered(1)),
            ],
            out_specs=pl.BlockSpec((tn, f_out), lambda i, k: (i, 0)),
            scratch_shapes=[
                pltpu.VMEM((tn, f_in), jnp.float32),   # neighbor-sum accumulator
                pltpu.VMEM((tn, 1), jnp.float32),      # in-degree accumulator
            ],
        ),
        compiler_params=pltpu.CompilerParams(
            dimension_semantics=("parallel", "arbitrary"),
            vmem_limit_bytes=vmem_limit),
        cost_estimate=pl.CostEstimate(flops=int(flops), transcendentals=0,
                                      bytes_accessed=int(bytes_accessed)),
    )(src_p, dst_p, x_p, w_cat, bl)
    return out[:n]


if __name__ == "__main__":
    key = jax.random.PRNGKey(0)
    k_x, k_src, k_dst, k_wl, k_bl, k_wr = jax.random.split(key, 6)

    N = 128            # num_nodes
    F_IN = 128         # in_channels  (lane-dense)
    F_OUT = 128        # out_channels (lane-dense)
    E = 512            # num_edges

    x = jax.random.normal(k_x, (N, F_IN), dtype=jnp.float32)
    src = jax.random.randint(k_src, (E,), 0, N, dtype=jnp.int32)
    dst = jax.random.randint(k_dst, (E,), 0, N, dtype=jnp.int32)
    edge_index = jnp.stack([src, dst], axis=0)                 # (2, E)

    bound = 1.0 / (F_IN ** 0.5)            # torch.nn.Linear default init scale
    w_l = jax.random.uniform(k_wl, (F_OUT, F_IN), jnp.float32, -bound, bound)
    b_l = jax.random.uniform(k_bl, (F_OUT,), jnp.float32, -bound, bound)
    w_r = jax.random.uniform(k_wr, (F_OUT, F_IN), jnp.float32, -bound, bound)

    out = sageconv_gnnb(x, edge_index, w_l, b_l, w_r)
    out = jax.block_until_ready(out)

    # Reference: PyG SAGEConv forward (mean aggr, root weight, bias on lin_l).
    deg = jnp.zeros((N,), jnp.float32).at[dst].add(1.0)
    nsum = jnp.zeros((N, F_IN), jnp.float32).at[dst].add(x[src])
    mean = jnp.where(deg[:, None] > 0,
                     nsum / jnp.maximum(deg[:, None], 1.0), 0.0)
    ref = mean @ w_l.T + b_l[None, :] + x @ w_r.T

    assert out.shape == (N, F_OUT)
    # Tolerance covers bf16-operand / f32-accumulate MXU matmuls and the EUP
    # approx reciprocal vs. the full-f32 XLA reference.
    assert jnp.allclose(out, ref, atol=5e-2, rtol=5e-2), \
        float(jnp.max(jnp.abs(out - ref)))

    print("KERNEL_OK")
</pallas_src>

<mosaic_0001>
module attributes {stable_mosaic.version = 11 : i64} {
  func.func @_sage_kernel(%arg0: i32, %arg1: i32, %arg2: memref<1x512xi32, #tpu.memory_space<vmem>>, %arg3: memref<1x512xi32, #tpu.memory_space<vmem>>, %arg4: memref<128x128xbf16, #tpu.memory_space<vmem>>, %arg5: memref<256x128xbf16, #tpu.memory_space<vmem>>, %arg6: memref<1x128xf32, #tpu.memory_space<vmem>>, %arg7: memref<64x128xf32, #tpu.memory_space<vmem>>, %arg8: memref<64x128xf32, #tpu.memory_space<vmem>>, %arg9: memref<64x1xf32, #tpu.memory_space<vmem>>) attributes {dimension_semantics = [#tpu.dimension_semantics<parallel>, #tpu.dimension_semantics<arbitrary>], iteration_bounds = array<i64: 2, 1>, scalar_prefetch = 0 : i64, scratch_operands = 2 : i64, tpu.core_type = #tpu.core_type<tc>, window_params = [{transform_indices = @transform_0, window_bounds = array<i64: 1, 512>}, {transform_indices = @transform_1, window_bounds = array<i64: 1, 512>}, {pipeline_mode = #tpu.pipeline_mode<synchronous>, transform_indices = @transform_2, window_bounds = array<i64: 128, 128>}, {pipeline_mode = #tpu.pipeline_mode<synchronous>, transform_indices = @transform_3, window_bounds = array<i64: 256, 128>}, {pipeline_mode = #tpu.pipeline_mode<synchronous>, transform_indices = @transform_4, window_bounds = array<i64: 1, 128>}, {transform_indices = @transform_5, window_bounds = array<i64: 64, 128>}]} {
    %c0_i32 = arith.constant 0 : i32
    %0 = arith.cmpi eq, %arg1, %c0_i32 : i32
    %1 = arith.extui %0 : i1 to i32
    %c0_i32_0 = arith.constant 0 : i32
    %2 = arith.cmpi ne, %1, %c0_i32_0 : i32
    scf.if %2 {
      %cst_18 = arith.constant 0.000000e+00 : f32
      %35 = vector.broadcast %cst_18 : f32 to vector<64x128xf32>
      %c0_19 = arith.constant 0 : index
      %c0_20 = arith.constant 0 : index
      %36 = vector.load %arg8[%c0_19, %c0_20] : memref<64x128xf32, #tpu.memory_space<vmem>>, vector<64x128xf32>
      tpu.vector_store %arg8[%c0_19, %c0_20], %35 {strides = array<i32>} : memref<64x128xf32, #tpu.memory_space<vmem>>, vector<64x128xf32>,
      %cst_21 = arith.constant 0.000000e+00 : f32
      %37 = vector.broadcast %cst_21 : f32 to vector<64x1xf32>
      %c0_22 = arith.constant 0 : index
      %c0_23 = arith.constant 0 : index
      %38 = vector.load %arg9[%c0_22, %c0_23] : memref<64x1xf32, #tpu.memory_space<vmem>>, vector<64x1xf32>
      tpu.vector_store %arg9[%c0_22, %c0_23], %37 {strides = array<i32>} : memref<64x1xf32, #tpu.memory_space<vmem>>, vector<64x1xf32>,
    } else {
    }
    %c0 = arith.constant 0 : index
    %c0_1 = arith.constant 0 : index
    %3 = vector.load %arg2[%c0, %c0_1] : memref<1x512xi32, #tpu.memory_space<vmem>>, vector<1x512xi32>
    %c0_2 = arith.constant 0 : index
    %c0_3 = arith.constant 0 : index
    %4 = vector.load %arg3[%c0_2, %c0_3] : memref<1x512xi32, #tpu.memory_space<vmem>>, vector<1x512xi32>
    %c64_i32 = arith.constant 64 : i32
    %5 = arith.muli %arg0, %c64_i32 : i32
    %6 = vector.broadcast %5 : i32 to vector<1x512xi32>
    %7 = arith.subi %4, %6 : vector<1x512xi32>
    %8 = tpu.iota {dimensions = array<i32: 0>} : vector<64x512xi32>
    %9 = vector.broadcast %7 : vector<1x512xi32> to vector<64x512xi32>
    %10 = arith.cmpi eq, %8, %9 : vector<64x512xi32>
    %11 = arith.extui %10 : vector<64x512xi1> to vector<64x512xi32>
    %12 = arith.sitofp %11 : vector<64x512xi32> to vector<64x512xf32>
    %13 = arith.truncf %12 : vector<64x512xf32> to vector<64x512xbf16>
    %14 = tpu.iota {dimensions = array<i32: 0>} : vector<128x512xi32>
    %15 = vector.broadcast %3 : vector<1x512xi32> to vector<128x512xi32>
    %16 = arith.cmpi eq, %14, %15 : vector<128x512xi32>
    %17 = arith.extui %16 : vector<128x512xi1> to vector<128x512xi32>
    %18 = arith.sitofp %17 : vector<128x512xi32> to vector<128x512xf32>
    %19 = arith.truncf %18 : vector<128x512xf32> to vector<128x512xbf16>
    %cst = arith.constant dense<0.000000e+00> : vector<64x128xf32>
    %20 = tpu.matmul %13, %19, %cst {dimension_numbers = #tpu.dot_dimension_numbers<[1], [1], [0], [0], [0, 0, 1, 0], [], []>} : vector<64x512xbf16>, vector<128x512xbf16>, vector<64x128xf32> -> vector<64x128xf32>
    %c0_4 = arith.constant 0 : index
    %c0_5 = arith.constant 0 : index
    %21 = vector.load %arg9[%c0_4, %c0_5] : memref<64x1xf32, #tpu.memory_space<vmem>>, vector<64x1xf32>
    %cst_6 = arith.constant dense<0.000000e+00> : vector<64xf32>
    %22 = vector.multi_reduction <add>, %20, %cst_6 [1] : vector<64x128xf32> to vector<64xf32>
    %23 = vector.shape_cast %22 : vector<64xf32> to vector<64x1xf32>
    %24 = arith.addf %21, %23 : vector<64x1xf32>
    %c0_7 = arith.constant 0 : index
    %c0_8 = arith.constant 0 : index
    %25 = vector.load %arg9[%c0_7, %c0_8] : memref<64x1xf32, #tpu.memory_space<vmem>>, vector<64x1xf32>
    tpu.vector_store %arg9[%c0_7, %c0_8], %24 {strides = array<i32>} : memref<64x1xf32, #tpu.memory_space<vmem>>, vector<64x1xf32>,
    %c0_9 = arith.constant 0 : index
    %c0_10 = arith.constant 0 : index
    %26 = vector.load %arg8[%c0_9, %c0_10] : memref<64x128xf32, #tpu.memory_space<vmem>>, vector<64x128xf32>
    %27 = arith.truncf %20 : vector<64x128xf32> to vector<64x128xbf16>
    %c0_11 = arith.constant 0 : index
    %c0_12 = arith.constant 0 : index
    %28 = vector.load %arg4[%c0_11, %c0_12] : memref<128x128xbf16, #tpu.memory_space<vmem>>, vector<128x128xbf16>
    %cst_13 = arith.constant dense<0.000000e+00> : vector<64x128xf32>
    %29 = tpu.matmul %27, %28, %cst_13 {dimension_numbers = #tpu.dot_dimension_numbers<[1], [0], [0], [1], [0, 0, 1, 1], [], []>} : vector<64x128xbf16>, vector<128x128xbf16>, vector<64x128xf32> -> vector<64x128xf32>
    %30 = arith.addf %26, %29 : vector<64x128xf32>
    %c0_14 = arith.constant 0 : index
    %c0_15 = arith.constant 0 : index
    %31 = vector.load %arg8[%c0_14, %c0_15] : memref<64x128xf32, #tpu.memory_space<vmem>>, vector<64x128xf32>
    tpu.vector_store %arg8[%c0_14, %c0_15], %30 {strides = array<i32>} : memref<64x128xf32, #tpu.memory_space<vmem>>, vector<64x128xf32>,
    %c0_i32_16 = arith.constant 0 : i32
    %32 = arith.cmpi eq, %arg1, %c0_i32_16 : i32
    %33 = arith.extui %32 : i1 to i32
    %c0_i32_17 = arith.constant 0 : i32
    %34 = arith.cmpi ne, %33, %c0_i32_17 : i32
    scf.if %34 {
      %c0_18 = arith.constant 0 : index
      %c0_19 = arith.constant 0 : index
      %35 = vector.load %arg9[%c0_18, %c0_19] : memref<64x1xf32, #tpu.memory_space<vmem>>, vector<64x1xf32>
      %cst_20 = arith.constant 1.000000e+00 : f32
      %36 = vector.broadcast %cst_20 : f32 to vector<64x1xf32>
      %37 = arith.maximumf %35, %36 : vector<64x1xf32>
      %38 = tpu.reciprocal %37 {approx = true} : vector<64x1xf32> -> vector<64x1xf32>
      %c0_21 = arith.constant 0 : index
      %c0_22 = arith.constant 0 : index
      %39 = vector.load %arg8[%c0_21, %c0_22] : memref<64x128xf32, #tpu.memory_space<vmem>>, vector<64x128xf32>
      %40 = vector.broadcast %38 : vector<64x1xf32> to vector<64x128xf32>
      %41 = arith.mulf %39, %40 : vector<64x128xf32>
      %42 = arith.truncf %41 : vector<64x128xf32> to vector<64x128xbf16>
      %c64_i32_23 = arith.constant 64 : i32
      %43 = arith.muli %arg0, %c64_i32_23 : i32
      %44 = tpu.assume_multiple %43, 64 : i32
      %45 = arith.index_cast %44 : i32 to index
      %c0_24 = arith.constant 0 : index
      %46 = vector.load %arg4[%45, %c0_24] : memref<128x128xbf16, #tpu.memory_space<vmem>>, vector<64x128xbf16>
      %47 = tpu.concatenate %42, %46 in 1 : vector<64x128xbf16>, vector<64x128xbf16> -> vector<64x256xbf16>
      %c0_25 = arith.constant 0 : index
      %c0_26 = arith.constant 0 : index
      %48 = vector.load %arg5[%c0_25, %c0_26] : memref<256x128xbf16, #tpu.memory_space<vmem>>, vector<256x128xbf16>
      %cst_27 = arith.constant dense<0.000000e+00> : vector<64x128xf32>
      %49 = tpu.matmul %47, %48, %cst_27 {dimension_numbers = #tpu.dot_dimension_numbers<[1], [0], [0], [1], [0, 0, 1, 1], [], []>} : vector<64x256xbf16>, vector<256x128xbf16>, vector<64x128xf32> -> vector<64x128xf32>
      %c0_28 = arith.constant 0 : index
      %c0_29 = arith.constant 0 : index
      %50 = vector.load %arg6[%c0_28, %c0_29] : memref<1x128xf32, #tpu.memory_space<vmem>>, vector<1x128xf32>
      %51 = vector.broadcast %50 : vector<1x128xf32> to vector<64x128xf32>
      %52 = arith.addf %49, %51 : vector<64x128xf32>
      %c0_30 = arith.constant 0 : index
      %c0_31 = arith.constant 0 : index
      %53 = vector.load %arg7[%c0_30, %c0_31] : memref<64x128xf32, #tpu.memory_space<vmem>>, vector<64x128xf32>
      tpu.vector_store %arg7[%c0_30, %c0_31], %52 {strides = array<i32>} : memref<64x128xf32, #tpu.memory_space<vmem>>, vector<64x128xf32>,
    } else {
    }
    return
  }
  func.func @transform_0(%arg0: i32, %arg1: i32) -> (i32, i32) {
    %c0_i32 = arith.constant 0 : i32
    %c0_i32_0 = arith.constant 0 : i32
    return %c0_i32, %arg1 : i32, i32
  }
  func.func @transform_1(%arg0: i32, %arg1: i32) -> (i32, i32) {
    %c0_i32 = arith.constant 0 : i32
    %c0_i32_0 = arith.constant 0 : i32
    return %c0_i32, %arg1 : i32, i32
  }
  func.func @transform_2(%arg0: i32, %arg1: i32) -> (i32, i32) {
    %c0_i32 = arith.constant 0 : i32
    %c0_i32_0 = arith.constant 0 : i32
    %c0_i32_1 = arith.constant 0 : i32
    return %c0_i32, %c0_i32_0 : i32, i32
  }
  func.func @transform_3(%arg0: i32, %arg1: i32) -> (i32, i32) {
    %c0_i32 = arith.constant 0 : i32
    %c0_i32_0 = arith.constant 0 : i32
    %c0_i32_1 = arith.constant 0 : i32
    return %c0_i32, %c0_i32_0 : i32, i32
  }
  func.func @transform_4(%arg0: i32, %arg1: i32) -> (i32, i32) {
    %c0_i32 = arith.constant 0 : i32
    %c0_i32_0 = arith.constant 0 : i32
    %c0_i32_1 = arith.constant 0 : i32
    return %c0_i32, %c0_i32_0 : i32, i32
  }
  func.func @transform_5(%arg0: i32, %arg1: i32) -> (i32, i32) {
    %c0_i32 = arith.constant 0 : i32
    %c0_i32_0 = arith.constant 0 : i32
    return %arg0, %c0_i32 : i32, i32
  }
}

</mosaic_0001>

<llo_original>
// kernel: tpu_custom_call.1
$region0: #{tpu_custom_call.1}
  #allocation0 [shape = 'u32[]', space=smem, size = 0x4, offset = 0x4, fixed_abs, tag = 'smem constant byte address 0x4 - core index']
  #allocation1 [shape = 'u32[72,128]{1,0:T(1,128)}', space=vmem, size = 0x9000, scoped, tag = 'internal scratch']
  #allocation2 [shape = 'f32[64,128]{1,0:T(8,128)}', space=vmem, size = 0x8000, scoped, tag = 'scratch operand']
  #allocation3 [shape = 'f32[64,1]{1,0:T(8,128)}', space=vmem, size = 0x8000, scoped, tag = 'scratch operand']
  %s0 = inlined_call_operand.hbm [shape: s32[1,512], index: 0, kind: input, shape index: {}]
  %s1 = inlined_call_operand.hbm [shape: s32[1,512], index: 1, kind: input, shape index: {}]
  %s2 = inlined_call_operand.hbm [shape: bf16[128,128], index: 2, kind: input, shape index: {}]
  %s3 = inlined_call_operand.hbm [shape: bf16[256,128], index: 3, kind: input, shape index: {}]
  %s4 = inlined_call_operand.vmem [shape: f32[1,128], index: 4, kind: input, shape index: {}]
  %s5 = inlined_call_operand.hbm [shape: f32[128,128], index: 5, kind: output, shape index: {}]
  %s6 = sld [smem:[#allocation0]]
  $region77: #{tpu_custom_call.1} parent=0
    _
  %s8 = ssub.s32 1, %s6
  %s9 = scalar_select 0, %s8, %s6
  $region1: #{tpu_custom_call.1} parent=0
    #allocation4 [shape = 'u8[2048]{0}', space=vmem, size = 0x800, scoped, tag = 'input window, operand 0, single buffered']
    #allocation5 [shape = 's32[2]{0}', space=sflag, size = 0x8, scoped, tag = 'scoped memory for tpu_custom_call.1']
    #allocation6 [shape = 's32[2]{0}', space=sflag, size = 0x8, scoped, tag = 'scoped memory for tpu_custom_call.1']
    #allocation7 [shape = 'u8[2048]{0}', space=vmem, size = 0x800, scoped, tag = 'input window, operand 1, single buffered']
    #allocation8 [shape = 's32[1]{0}', space=sflag, size = 0x4, scoped, tag = 'scoped memory for tpu_custom_call.1']
    #allocation9 [shape = 'u8[32768]{0}', space=vmem, size = 0x8000, scoped, tag = 'input window, operand 2, single buffered']
    #allocation10 [shape = 'u8[65536]{0}', space=vmem, size = 0x10000, scoped, tag = 'input window, operand 3, single buffered']
    #allocation11 [shape = 's32[1]{0}', space=sflag, size = 0x4, scoped, tag = 'scoped memory for tpu_custom_call.1']
    #allocation12 [shape = 'u8[65536]{0}', space=vmem, size = 0x10000, scoped, tag = 'output window, operand 0']
    %10 = vsyncpa [#allocation5], 0
    %11 = vsyncpa [#allocation8], 0
    %12 = vsyncpa [#allocation11], 0
    %13 = vsyncpa [#allocation6], 0
    %s14 = scalar_lea.sflag [#allocation6], 1
    %15 = vsyncpa %s14, 0
    loop: start=0, step=1, limit=4
    $region2: #{tpu_custom_call.1} parent=1 // loop_pre_header
      _
    $region3: #{tpu_custom_call.1} parent=1 // loop_header
      %s17 = sphi 0, %s21
      %p18 = scmp.ge.s32.totalorder %s17, 4
      %s24 = sphi 0, %s36
      %s25 = sphi 0, %s32
      %s26 = sphi 0, %s24
      %s27 = sphi 0, %s25
      %s28 = sphi 0, %s26
      %s29 = sphi 0, %s27
      %s39 = sphi 0, %s41
      %s42 = sphi 0, %s39
      %s43 = sphi 0, %s42
      %s59 = sphi 0, %s43
      %s65 = sphi 0, %s67
      %s68 = sphi 0, %s65
      %s69 = sphi 0, %s68
      %s85 = sphi 0, %s69
      %s89 = sphi 0, %s89
      %s91 = sphi 0, %s89
      %s92 = sphi 0, %s91
      %s106 = sphi 0, %s92
      %s110 = sphi 0, %s110
      %s112 = sphi 0, %s110
      %s113 = sphi 0, %s112
      %s127 = sphi 0, %s113
      %s131 = sphi 0, %s131
      %s133 = sphi 0, %s131
      %s134 = sphi 0, %s133
      %s148 = sphi 0, %s134
      %s154 = sphi 0, %s156
      %s157 = sphi 0, %s154
      %s158 = sphi 0, %s157
      %s174 = sphi 0, %s158
    $region4: #{tpu_custom_call.1} parent=1 // loop_header_branch
      %20 = sbr.rel (%p18) target = $region8
    $region5: #{tpu_custom_call.1} parent=1 // loop_body
      %s22 = ssub.s32 %s17, 1
      %s23 = ssub.s32 %s17, 2
      %s30 = sadd.s32 1, %s25
      %p31 = scmp.ge.s32.totalorder %s30, 1
      %s32 = scalar_select %p31, 0, %s30
      %s33 = sadd.s32 1, %s24
      %s34 = scalar_select %p31, %s33, %s24
      %p35 = scmp.ge.s32.totalorder %s34, 2
      %s36 = scalar_select %p35, 0, %s34
      %s37 = ssub.s32 %s25, %s32
      %p38 = scmp.eq.s32.totalorder %s37, 0
      %s40 = sadd.s32 %s39, 1
      %s41 = scalar_select %p38, %s39, %s40
      %p44 = pneg %p38
      %p45 = scmp.eq.s32.totalorder %s17, 1
      %p46 = por %p44, %p45
      %p47 = scmp.ne.s32.totalorder %s39, %s42
      %p48 = scmp.eq.s32.totalorder %s17, 0
      %p49 = por %p47, %p48
      %p50 = scmp.ne.s32.totalorder %s39, %s42
      %p51 = scmp.eq.s32.totalorder %s22, 1
      %p52 = por %p50, %p51
      %p53 = scmp.ne.s32.totalorder %s42, %s43
      %p54 = scmp.eq.s32.totalorder %s22, 0
      %p55 = por %p53, %p54
      %p56 = scmp.ne.s32.totalorder %s42, %s43
      %p57 = scmp.eq.s32.totalorder %s23, 1
      %p58 = por %p56, %p57
      %p60 = scmp.ne.s32.totalorder %s43, %s59
      %p61 = scmp.eq.s32.totalorder %s23, 0
      %p62 = por %p60, %p61
      %s63 = ssub.s32 %s25, %s32
      %p64 = scmp.eq.s32.totalorder %s63, 0
      %s66 = sadd.s32 %s65, 1
      %s67 = scalar_select %p64, %s65, %s66
      %p70 = pneg %p64
      %p71 = scmp.eq.s32.totalorder %s17, 1
      %p72 = por %p70, %p71
      %p73 = scmp.ne.s32.totalorder %s65, %s68
      %p74 = scmp.eq.s32.totalorder %s17, 0
      %p75 = por %p73, %p74
      %p76 = scmp.ne.s32.totalorder %s65, %s68
      %p77 = scmp.eq.s32.totalorder %s22, 1
      %p78 = por %p76, %p77
      %p79 = scmp.ne.s32.totalorder %s68, %s69
      %p80 = scmp.eq.s32.totalorder %s22, 0
      %p81 = por %p79, %p80
      %p82 = scmp.ne.s32.totalorder %s68, %s69
      %p83 = scmp.eq.s32.totalorder %s23, 1
      %p84 = por %p82, %p83
      %p86 = scmp.ne.s32.totalorder %s69, %s85
      %p87 = scmp.eq.s32.totalorder %s23, 0
      %p88 = por %p86, %p87
      %s90 = sadd.s32 %s89, 1
      %p93 = scmp.eq.s32.totalorder %s17, 1
      %p94 = scmp.ne.s32.totalorder %s89, %s91
      %p95 = scmp.eq.s32.totalorder %s17, 0
      %p96 = por %p94, %p95
      %p97 = scmp.ne.s32.totalorder %s89, %s91
      %p98 = scmp.eq.s32.totalorder %s22, 1
      %p99 = por %p97, %p98
      %p100 = scmp.ne.s32.totalorder %s91, %s92
      %p101 = scmp.eq.s32.totalorder %s22, 0
      %p102 = por %p100, %p101
      %p103 = scmp.ne.s32.totalorder %s91, %s92
      %p104 = scmp.eq.s32.totalorder %s23, 1
      %p105 = por %p103, %p104
      %p107 = scmp.ne.s32.totalorder %s92, %s106
      %p108 = scmp.eq.s32.totalorder %s23, 0
      %p109 = por %p107, %p108
      %s111 = sadd.s32 %s110, 1
      %p114 = scmp.eq.s32.totalorder %s17, 1
      %p115 = scmp.ne.s32.totalorder %s110, %s112
      %p116 = scmp.eq.s32.totalorder %s17, 0
      %p117 = por %p115, %p116
      %p118 = scmp.ne.s32.totalorder %s110, %s112
      %p119 = scmp.eq.s32.totalorder %s22, 1
      %p120 = por %p118, %p119
      %p121 = scmp.ne.s32.totalorder %s112, %s113
      %p122 = scmp.eq.s32.totalorder %s22, 0
      %p123 = por %p121, %p122
      %p124 = scmp.ne.s32.totalorder %s112, %s113
      %p125 = scmp.eq.s32.totalorder %s23, 1
      %p126 = por %p124, %p125
      %p128 = scmp.ne.s32.totalorder %s113, %s127
      %p129 = scmp.eq.s32.totalorder %s23, 0
      %p130 = por %p128, %p129
      %s132 = sadd.s32 %s131, 1
      %p135 = scmp.eq.s32.totalorder %s17, 1
      %p136 = scmp.ne.s32.totalorder %s131, %s133
      %p137 = scmp.eq.s32.totalorder %s17, 0
      %p138 = por %p136, %p137
      %p139 = scmp.ne.s32.totalorder %s131, %s133
      %p140 = scmp.eq.s32.totalorder %s22, 1
      %p141 = por %p139, %p140
      %p142 = scmp.ne.s32.totalorder %s133, %s134
      %p143 = scmp.eq.s32.totalorder %s22, 0
      %p144 = por %p142, %p143
      %p145 = scmp.ne.s32.totalorder %s133, %s134
      %p146 = scmp.eq.s32.totalorder %s23, 1
      %p147 = por %p145, %p146
      %p149 = scmp.ne.s32.totalorder %s134, %s148
      %p150 = scmp.eq.s32.totalorder %s23, 0
      %p151 = por %p149, %p150
      %s152 = ssub.s32 %s24, %s36
      %p153 = scmp.eq.s32.totalorder %s152, 0
      %s155 = sadd.s32 %s154, 1
      %s156 = scalar_select %p153, %s154, %s155
      %p159 = pneg %p153
      %p160 = scmp.eq.s32.totalorder %s17, 1
      %p161 = por %p159, %p160
      %p162 = scmp.ne.s32.totalorder %s154, %s157
      %p163 = scmp.eq.s32.totalorder %s17, 0
      %p164 = por %p162, %p163
      %p165 = scmp.ne.s32.totalorder %s154, %s157
      %p166 = scmp.eq.s32.totalorder %s22, 1
      %p167 = por %p165, %p166
      %p168 = scmp.ne.s32.totalorder %s157, %s158
      %p169 = scmp.eq.s32.totalorder %s22, 0
      %p170 = por %p168, %p169
      %p171 = scmp.ne.s32.totalorder %s157, %s158
      %p172 = scmp.eq.s32.totalorder %s23, 1
      %p173 = por %p171, %p172
      %p175 = scmp.ne.s32.totalorder %s158, %s174
      %p176 = scmp.eq.s32.totalorder %s23, 0
      %p177 = por %p175, %p176
      %p178 = scmp.le.s32.totalorder 1, %s17
      %p179 = scmp.lt.s32.totalorder %s17, 3
      %p180 = pnand %p178, %p179
      %p181 = pneg %p180
      // Predicated region
      $region9: #{tpu_custom_call.1} parent=5 // pred_check
        _
      $region10: #{tpu_custom_call.1} parent=5 // pred_check_branch
        %183 = sbr.rel (%p180) target = $region12
      $region11: #{tpu_custom_call.1} parent=5 // pred_region
        %s184 = ssub.s32 %s17, 1
        // Predicated region
        $region13: #{tpu_custom_call.1} parent=11 // pred_check
          %p185 = pneg %p55
        $region14: #{tpu_custom_call.1} parent=11 // pred_check_branch
          %187 = sbr.rel (%p185) target = $region16
        $region15: #{tpu_custom_call.1} parent=11 // pred_region
          %s188 = smul.u32 4, %s27
          %190 = vsyncadd [#allocation5], 0
          %s191 = scalar_lea.hbm %s0, %s188
          %s193 = sshll.u32 %s191, 4
          %s194 = int_to_ptr.hbm [resolvable:$true] %s193
          %s195 = sshll.u32 [#allocation4], 4
          %s196 = int_to_ptr.vmem [resolvable:$true] %s195
          %198 = dma.hbm_to_vmem [thread:$0]  %s194, 64, %s196, [#allocation5]
        $region16: #{tpu_custom_call.1} parent=11 // pred_fallthru
          _
        // Predicated region
        $region17: #{tpu_custom_call.1} parent=11 // pred_check
          %p199 = pneg %p81
        $region18: #{tpu_custom_call.1} parent=11 // pred_check_branch
          %201 = sbr.rel (%p199) target = $region20
        $region19: #{tpu_custom_call.1} parent=11 // pred_region
          %s202 = smul.u32 4, %s27
          %204 = vsyncadd [#allocation8], 0
          %s205 = scalar_lea.hbm %s1, %s202
          %s207 = sshll.u32 %s205, 4
          %s208 = int_to_ptr.hbm [resolvable:$true] %s207
          %s209 = sshll.u32 [#allocation7], 4
          %s210 = int_to_ptr.vmem [resolvable:$true] %s209
          %212 = dma.hbm_to_vmem [thread:$0]  %s208, 64, %s210, [#allocation8]
        $region20: #{tpu_custom_call.1} parent=11 // pred_fallthru
          _
        // Predicated region
        $region21: #{tpu_custom_call.1} parent=11 // pred_check
          %p213 = pneg %p102
        $region22: #{tpu_custom_call.1} parent=11 // pred_check_branch
          %215 = sbr.rel (%p213) target = $region24
        $region23: #{tpu_custom_call.1} parent=11 // pred_region
          %217 = vsyncadd [#allocation8], 0
          %s218 = sshll.u32 %s2, 4
          %s219 = int_to_ptr.hbm [resolvable:$true] %s218
          %s220 = sshll.u32 [#allocation9], 4
          %s221 = int_to_ptr.vmem [resolvable:$true] %s220
          %226 = dma.hbm_to_vmem [thread:$0]  %s219, 1024, %s221, [#allocation8], 64, 64, 4
        $region24: #{tpu_custom_call.1} parent=11 // pred_fallthru
          _
        // Predicated region
        $region25: #{tpu_custom_call.1} parent=11 // pred_check
          %p227 = pneg %p123
        $region26: #{tpu_custom_call.1} parent=11 // pred_check_branch
          %229 = sbr.rel (%p227) target = $region28
        $region27: #{tpu_custom_call.1} parent=11 // pred_region
          %231 = vsyncadd [#allocation11], 0
          %s232 = sshll.u32 %s3, 4
          %s233 = int_to_ptr.hbm [resolvable:$true] %s232
          %s234 = sshll.u32 [#allocation10], 4
          %s235 = int_to_ptr.vmem [resolvable:$true] %s234
          %240 = dma.hbm_to_vmem [thread:$0]  %s233, 2048, %s235, [#allocation11], 64, 64, 4
        $region28: #{tpu_custom_call.1} parent=11 // pred_fallthru
          _
        // Predicated region
        $region29: #{tpu_custom_call.1} parent=11 // pred_check
          %p241 = pneg %p144
        $region30: #{tpu_custom_call.1} parent=11 // pred_check_branch
          %243 = sbr.rel (%p241) target = $region32
        $region31: #{tpu_custom_call.1} parent=11 // pred_region
          _
        $region32: #{tpu_custom_call.1} parent=11 // pred_fallthru
          _
      $region12: #{tpu_custom_call.1} parent=5 // pred_fallthru
        _
      %p244 = scmp.lt.s32.totalorder %s17, 2
      // Predicated region
      $region33: #{tpu_custom_call.1} parent=5 // pred_check
        %p245 = pneg %p244
      $region34: #{tpu_custom_call.1} parent=5 // pred_check_branch
        %247 = sbr.rel (%p245) target = $region36
      $region35: #{tpu_custom_call.1} parent=5 // pred_region
        _
      $region36: #{tpu_custom_call.1} parent=5 // pred_fallthru
        _
      %p248 = scmp.le.s32.totalorder 1, %s17
      %p249 = scmp.lt.s32.totalorder %s17, 3
      %p250 = pnand %p248, %p249
      %p251 = pneg %p250
      // Predicated region
      $region37: #{tpu_custom_call.1} parent=5 // pred_check
        _
      $region38: #{tpu_custom_call.1} parent=5 // pred_check_branch
        %253 = sbr.rel (%p250) target = $region40
      $region39: #{tpu_custom_call.1} parent=5 // pred_region
        %s254 = ssub.s32 %s17, 1
        // Predicated region
        $region41: #{tpu_custom_call.1} parent=39 // pred_check
          %p255 = pneg %p55
        $region42: #{tpu_custom_call.1} parent=39 // pred_check_branch
          %257 = sbr.rel (%p255) target = $region44
        $region43: #{tpu_custom_call.1} parent=39 // pred_region
          %259 = dma.done [#allocation5], 64
        $region44: #{tpu_custom_call.1} parent=39 // pred_fallthru
          _
        // Predicated region
        $region45: #{tpu_custom_call.1} parent=39 // pred_check
          %p260 = pneg %p81
        $region46: #{tpu_custom_call.1} parent=39 // pred_check_branch
          %262 = sbr.rel (%p260) target = $region48
        $region47: #{tpu_custom_call.1} parent=39 // pred_region
          %264 = dma.done [#allocation8], 64
        $region48: #{tpu_custom_call.1} parent=39 // pred_fallthru
          _
        // Predicated region
        $region49: #{tpu_custom_call.1} parent=39 // pred_check
          %p265 = pneg %p102
        $region50: #{tpu_custom_call.1} parent=39 // pred_check_branch
          %267 = sbr.rel (%p265) target = $region52
        $region51: #{tpu_custom_call.1} parent=39 // pred_region
          %269 = dma.done [#allocation8], 1024
        $region52: #{tpu_custom_call.1} parent=39 // pred_fallthru
          _
        // Predicated region
        $region53: #{tpu_custom_call.1} parent=39 // pred_check
          %p270 = pneg %p123
        $region54: #{tpu_custom_call.1} parent=39 // pred_check_branch
          %272 = sbr.rel (%p270) target = $region56
        $region55: #{tpu_custom_call.1} parent=39 // pred_region
          %274 = dma.done [#allocation11], 2048
        $region56: #{tpu_custom_call.1} parent=39 // pred_fallthru
          _
        %p275 = pneg %p55
        %p276 = pneg %p52
        %p277 = pneg %p81
        %p278 = pneg %p78
        %p279 = pneg %p102
        %p280 = pneg %p99
        %p281 = pneg %p123
        %p282 = pneg %p120
        %p283 = pneg %p144
        %p284 = pneg %p141
        %p285 = pneg %p170
        %p286 = pneg %p167
        %s287 = sand.u32 %s157, 1
        %s288 = scalar_lea.sflag [#allocation6], %s287
        %s289 = sand.u32 %s157, 1
        %s290 = smul.addr %s289, 64
        %s291 = scalar_lea.vmem [#allocation12], %s290
        %s292 = smul.u32 4, %s27
        %s293 = smul.u32 4, %s27
        %s294 = smul.u32 8, %s26
        %p295 = scmp.eq.s32.totalorder %s27, 0
        // Predicated region
        $region57: #{tpu_custom_call.1} parent=39 // pred_check
          %p296 = pneg %p295
        $region58: #{tpu_custom_call.1} parent=39 // pred_check_branch
          %298 = sbr.rel (%p296) target = $region60
        $region59: #{tpu_custom_call.1} parent=39 // pred_region
          %299 = vst [vmem:[#allocation2] sm:$0xff] 0.0
          %300 = vst [vmem:[#allocation2 + $0x8] sm:$0xff] 0.0
          %301 = vst [vmem:[#allocation2 + $0x10] sm:$0xff] 0.0
          %302 = vst [vmem:[#allocation2 + $0x18] sm:$0xff] 0.0
          %303 = vst [vmem:[#allocation2 + $0x20] sm:$0xff] 0.0
          %304 = vst [vmem:[#allocation2 + $0x28] sm:$0xff] 0.0
          %305 = vst [vmem:[#allocation2 + $0x30] sm:$0xff] 0.0
          %306 = vst [vmem:[#allocation2 + $0x38] sm:$0xff] 0.0
          %vm307 = vcmask 7168
          %308 = vst.msk [vmem:[#allocation3] sm:$0xff] %vm307, 0.0
          %309 = vst.msk [vmem:[#allocation3 + $0x8] sm:$0xff] %vm307, 0.0
          %310 = vst.msk [vmem:[#allocation3 + $0x10] sm:$0xff] %vm307, 0.0
          %311 = vst.msk [vmem:[#allocation3 + $0x18] sm:$0xff] %vm307, 0.0
          %312 = vst.msk [vmem:[#allocation3 + $0x20] sm:$0xff] %vm307, 0.0
          %313 = vst.msk [vmem:[#allocation3 + $0x28] sm:$0xff] %vm307, 0.0
          %314 = vst.msk [vmem:[#allocation3 + $0x30] sm:$0xff] %vm307, 0.0
          %315 = vst.msk [vmem:[#allocation3 + $0x38] sm:$0xff] %vm307, 0.0
        $region60: #{tpu_custom_call.1} parent=39 // pred_fallthru
          _
        %v316 = vld [vmem:[#allocation4] sm:$0xf]
        %v317 = vld [vmem:[#allocation7] sm:$0xf]
        %s318 = smul.u32 %s26, 64
        %v319 = vstv %s318
        %v320 = vsub.s32 %v317, %v319
        %v321 = vlaneseq
        %v322 = vshrl.u32 %v321, 7
        %v323 = vadd.s32 %v322, 8
        %v324 = vadd.s32 %v322, 16
        %v325 = vadd.s32 %v322, 24
        %v326 = vadd.s32 %v322, 32
        %v327 = vadd.s32 %v322, 40
        %v328 = vadd.s32 %v322, 48
        %v329 = vadd.s32 %v322, 56
        %v330 = vperm.slane %v320, 0
        %v331 = vperm.slane %v320, 1
        %v332 = vperm.slane %v320, 2
        %v333 = vperm.slane %v320, 3
        %vm334 = vcmp.eq.s32.totalorder %v322, %v330
        %vm335 = vcmp.eq.s32.totalorder %v322, %v331
        %vm336 = vcmp.eq.s32.totalorder %v322, %v332
        %vm337 = vcmp.eq.s32.totalorder %v322, %v333
        %vm338 = vcmp.eq.s32.totalorder %v323, %v330
        %vm339 = vcmp.eq.s32.totalorder %v323, %v331
        %vm340 = vcmp.eq.s32.totalorder %v323, %v332
        %vm341 = vcmp.eq.s32.totalorder %v323, %v333
        %vm342 = vcmp.eq.s32.totalorder %v324, %v330
        %vm343 = vcmp.eq.s32.totalorder %v324, %v331
        %vm344 = vcmp.eq.s32.totalorder %v324, %v332
        %vm345 = vcmp.eq.s32.totalorder %v324, %v333
        %vm346 = vcmp.eq.s32.totalorder %v325, %v330
        %vm347 = vcmp.eq.s32.totalorder %v325, %v331
        %vm348 = vcmp.eq.s32.totalorder %v325, %v332
        %vm349 = vcmp.eq.s32.totalorder %v325, %v333
        %vm350 = vcmp.eq.s32.totalorder %v326, %v330
        %vm351 = vcmp.eq.s32.totalorder %v326, %v331
        %vm352 = vcmp.eq.s32.totalorder %v326, %v332
        %vm353 = vcmp.eq.s32.totalorder %v326, %v333
        %vm354 = vcmp.eq.s32.totalorder %v327, %v330
        %vm355 = vcmp.eq.s32.totalorder %v327, %v331
        %vm356 = vcmp.eq.s32.totalorder %v327, %v332
        %vm357 = vcmp.eq.s32.totalorder %v327, %v333
        %vm358 = vcmp.eq.s32.totalorder %v328, %v330
        %vm359 = vcmp.eq.s32.totalorder %v328, %v331
        %vm360 = vcmp.eq.s32.totalorder %v328, %v332
        %vm361 = vcmp.eq.s32.totalorder %v328, %v333
        %vm362 = vcmp.eq.s32.totalorder %v329, %v330
        %vm363 = vcmp.eq.s32.totalorder %v329, %v331
        %vm364 = vcmp.eq.s32.totalorder %v329, %v332
        %vm365 = vcmp.eq.s32.totalorder %v329, %v333
        %v366 = vsel %vm334, 1, 0
        %v367 = vsel %vm335, 1, 0
        %v368 = vsel %vm336, 1, 0
        %v369 = vsel %vm337, 1, 0
        %v370 = vsel %vm338, 1, 0
        %v371 = vsel %vm339, 1, 0
        %v372 = vsel %vm340, 1, 0
        %v373 = vsel %vm341, 1, 0
        %v374 = vsel %vm342, 1, 0
        %v375 = vsel %vm343, 1, 0
        %v376 = vsel %vm344, 1, 0
        %v377 = vsel %vm345, 1, 0
        %v378 = vsel %vm346, 1, 0
        %v379 = vsel %vm347, 1, 0
        %v380 = vsel %vm348, 1, 0
        %v381 = vsel %vm349, 1, 0
        %v382 = vsel %vm350, 1, 0
        %v383 = vsel %vm351, 1, 0
        %v384 = vsel %vm352, 1, 0
        %v385 = vsel %vm353, 1, 0
        %v386 = vsel %vm354, 1, 0
        %v387 = vsel %vm355, 1, 0
        %v388 = vsel %vm356, 1, 0
        %v389 = vsel %vm357, 1, 0
        %v390 = vsel %vm358, 1, 0
        %v391 = vsel %vm359, 1, 0
        %v392 = vsel %vm360, 1, 0
        %v393 = vsel %vm361, 1, 0
        %v394 = vsel %vm362, 1, 0
        %v395 = vsel %vm363, 1, 0
        %v396 = vsel %vm364, 1, 0
        %v397 = vsel %vm365, 1, 0
        %v398 = vcvt.s32.f32 %v366
        %v399 = vcvt.s32.f32 %v367
        %v400 = vcvt.s32.f32 %v368
        %v401 = vcvt.s32.f32 %v369
        %v402 = vcvt.s32.f32 %v370
        %v403 = vcvt.s32.f32 %v371
        %v404 = vcvt.s32.f32 %v372
        %v405 = vcvt.s32.f32 %v373
        %v406 = vcvt.s32.f32 %v374
        %v407 = vcvt.s32.f32 %v375
        %v408 = vcvt.s32.f32 %v376
        %v409 = vcvt.s32.f32 %v377
        %v410 = vcvt.s32.f32 %v378
        %v411 = vcvt.s32.f32 %v379
        %v412 = vcvt.s32.f32 %v380
        %v413 = vcvt.s32.f32 %v381
        %v414 = vcvt.s32.f32 %v382
        %v415 = vcvt.s32.f32 %v383
        %v416 = vcvt.s32.f32 %v384
        %v417 = vcvt.s32.f32 %v385
        %v418 = vcvt.s32.f32 %v386
        %v419 = vcvt.s32.f32 %v387
        %v420 = vcvt.s32.f32 %v388
        %v421 = vcvt.s32.f32 %v389
        %v422 = vcvt.s32.f32 %v390
        %v423 = vcvt.s32.f32 %v391
        %v424 = vcvt.s32.f32 %v392
        %v425 = vcvt.s32.f32 %v393
        %v426 = vcvt.s32.f32 %v394
        %v427 = vcvt.s32.f32 %v395
        %v428 = vcvt.s32.f32 %v396
        %v429 = vcvt.s32.f32 %v397
        %v430 = vpack.c.bf16 %v402, %v398
        %v431 = vpack.c.bf16 %v403, %v399
        %v432 = vpack.c.bf16 %v404, %v400
        %v433 = vpack.c.bf16 %v405, %v401
        %v434 = vpack.c.bf16 %v410, %v406
        %v435 = vpack.c.bf16 %v411, %v407
        %v436 = vpack.c.bf16 %v412, %v408
        %v437 = vpack.c.bf16 %v413, %v409
        %v438 = vpack.c.bf16 %v418, %v414
        %v439 = vpack.c.bf16 %v419, %v415
        %v440 = vpack.c.bf16 %v420, %v416
        %v441 = vpack.c.bf16 %v421, %v417
        %v442 = vpack.c.bf16 %v426, %v422
        %v443 = vpack.c.bf16 %v427, %v423
        %v444 = vpack.c.bf16 %v428, %v424
        %v445 = vpack.c.bf16 %v429, %v425
        %v446 = vadd.s32 %v322, 64
        %v447 = vadd.s32 %v322, 72
        %v448 = vadd.s32 %v322, 80
        %v449 = vadd.s32 %v322, 88
        %v450 = vadd.s32 %v322, 96
        %v451 = vadd.s32 %v322, 104
        %v452 = vadd.s32 %v322, 112
        %v453 = vadd.s32 %v322, 120
        %v454 = vperm.slane %v316, 0
        %v455 = vperm.slane %v316, 1
        %v456 = vperm.slane %v316, 2
        %v457 = vperm.slane %v316, 3
        %vm458 = vcmp.eq.s32.totalorder %v322, %v454
        %vm459 = vcmp.eq.s32.totalorder %v322, %v455
        %vm460 = vcmp.eq.s32.totalorder %v322, %v456
        %vm461 = vcmp.eq.s32.totalorder %v322, %v457
        %vm462 = vcmp.eq.s32.totalorder %v323, %v454
        %vm463 = vcmp.eq.s32.totalorder %v323, %v455
        %vm464 = vcmp.eq.s32.totalorder %v323, %v456
        %vm465 = vcmp.eq.s32.totalorder %v323, %v457
        %vm466 = vcmp.eq.s32.totalorder %v324, %v454
        %vm467 = vcmp.eq.s32.totalorder %v324, %v455
        %vm468 = vcmp.eq.s32.totalorder %v324, %v456
        %vm469 = vcmp.eq.s32.totalorder %v324, %v457
        %vm470 = vcmp.eq.s32.totalorder %v325, %v454
        %vm471 = vcmp.eq.s32.totalorder %v325, %v455
        %vm472 = vcmp.eq.s32.totalorder %v325, %v456
        %vm473 = vcmp.eq.s32.totalorder %v325, %v457
        %vm474 = vcmp.eq.s32.totalorder %v326, %v454
        %vm475 = vcmp.eq.s32.totalorder %v326, %v455
        %vm476 = vcmp.eq.s32.totalorder %v326, %v456
        %vm477 = vcmp.eq.s32.totalorder %v326, %v457
        %vm478 = vcmp.eq.s32.totalorder %v327, %v454
        %vm479 = vcmp.eq.s32.totalorder %v327, %v455
        %vm480 = vcmp.eq.s32.totalorder %v327, %v456
        %vm481 = vcmp.eq.s32.totalorder %v327, %v457
        %vm482 = vcmp.eq.s32.totalorder %v328, %v454
        %vm483 = vcmp.eq.s32.totalorder %v328, %v455
        %vm484 = vcmp.eq.s32.totalorder %v328, %v456
        %vm485 = vcmp.eq.s32.totalorder %v328, %v457
        %vm486 = vcmp.eq.s32.totalorder %v329, %v454
        %vm487 = vcmp.eq.s32.totalorder %v329, %v455
        %vm488 = vcmp.eq.s32.totalorder %v329, %v456
        %vm489 = vcmp.eq.s32.totalorder %v329, %v457
        %vm490 = vcmp.eq.s32.totalorder %v446, %v454
        %vm491 = vcmp.eq.s32.totalorder %v446, %v455
        %vm492 = vcmp.eq.s32.totalorder %v446, %v456
        %vm493 = vcmp.eq.s32.totalorder %v446, %v457
        %vm494 = vcmp.eq.s32.totalorder %v447, %v454
        %vm495 = vcmp.eq.s32.totalorder %v447, %v455
        %vm496 = vcmp.eq.s32.totalorder %v447, %v456
        %vm497 = vcmp.eq.s32.totalorder %v447, %v457
        %vm498 = vcmp.eq.s32.totalorder %v448, %v454
        %vm499 = vcmp.eq.s32.totalorder %v448, %v455
        %vm500 = vcmp.eq.s32.totalorder %v448, %v456
        %vm501 = vcmp.eq.s32.totalorder %v448, %v457
        %vm502 = vcmp.eq.s32.totalorder %v449, %v454
        %vm503 = vcmp.eq.s32.totalorder %v449, %v455
        %vm504 = vcmp.eq.s32.totalorder %v449, %v456
        %vm505 = vcmp.eq.s32.totalorder %v449, %v457
        %vm506 = vcmp.eq.s32.totalorder %v450, %v454
        %vm507 = vcmp.eq.s32.totalorder %v450, %v455
        %vm508 = vcmp.eq.s32.totalorder %v450, %v456
        %vm509 = vcmp.eq.s32.totalorder %v450, %v457
        %vm510 = vcmp.eq.s32.totalorder %v451, %v454
        %vm511 = vcmp.eq.s32.totalorder %v451, %v455
        %vm512 = vcmp.eq.s32.totalorder %v451, %v456
        %vm513 = vcmp.eq.s32.totalorder %v451, %v457
        %vm514 = vcmp.eq.s32.totalorder %v452, %v454
        %vm515 = vcmp.eq.s32.totalorder %v452, %v455
        %vm516 = vcmp.eq.s32.totalorder %v452, %v456
        %vm517 = vcmp.eq.s32.totalorder %v452, %v457
        %vm518 = vcmp.eq.s32.totalorder %v453, %v454
        %vm519 = vcmp.eq.s32.totalorder %v453, %v455
        %vm520 = vcmp.eq.s32.totalorder %v453, %v456
        %vm521 = vcmp.eq.s32.totalorder %v453, %v457
        %v522 = vsel %vm458, 1, 0
        %v523 = vsel %vm459, 1, 0
        %v524 = vsel %vm460, 1, 0
        %v525 = vsel %vm461, 1, 0
        %v526 = vsel %vm462, 1, 0
        %v527 = vsel %vm463, 1, 0
        %v528 = vsel %vm464, 1, 0
        %v529 = vsel %vm465, 1, 0
        %v530 = vsel %vm466, 1, 0
        %v531 = vsel %vm467, 1, 0
        %v532 = vsel %vm468, 1, 0
        %v533 = vsel %vm469, 1, 0
        %v534 = vsel %vm470, 1, 0
        %v535 = vsel %vm471, 1, 0
        %v536 = vsel %vm472, 1, 0
        %v537 = vsel %vm473, 1, 0
        %v538 = vsel %vm474, 1, 0
        %v539 = vsel %vm475, 1, 0
        %v540 = vsel %vm476, 1, 0
        %v541 = vsel %vm477, 1, 0
        %v542 = vsel %vm478, 1, 0
        %v543 = vsel %vm479, 1, 0
        %v544 = vsel %vm480, 1, 0
        %v545 = vsel %vm481, 1, 0
        %v546 = vsel %vm482, 1, 0
        %v547 = vsel %vm483, 1, 0
        %v548 = vsel %vm484, 1, 0
        %v549 = vsel %vm485, 1, 0
        %v550 = vsel %vm486, 1, 0
        %v551 = vsel %vm487, 1, 0
        %v552 = vsel %vm488, 1, 0
        %v553 = vsel %vm489, 1, 0
        %v554 = vsel %vm490, 1, 0
        %v555 = vsel %vm491, 1, 0
        %v556 = vsel %vm492, 1, 0
        %v557 = vsel %vm493, 1, 0
        %v558 = vsel %vm494, 1, 0
        %v559 = vsel %vm495, 1, 0
        %v560 = vsel %vm496, 1, 0
        %v561 = vsel %vm497, 1, 0
        %v562 = vsel %vm498, 1, 0
        %v563 = vsel %vm499, 1, 0
        %v564 = vsel %vm500, 1, 0
        %v565 = vsel %vm501, 1, 0
        %v566 = vsel %vm502, 1, 0
        %v567 = vsel %vm503, 1, 0
        %v568 = vsel %vm504, 1, 0
        %v569 = vsel %vm505, 1, 0
        %v570 = vsel %vm506, 1, 0
        %v571 = vsel %vm507, 1, 0
        %v572 = vsel %vm508, 1, 0
        %v573 = vsel %vm509, 1, 0
        %v574 = vsel %vm510, 1, 0
        %v575 = vsel %vm511, 1, 0
        %v576 = vsel %vm512, 1, 0
        %v577 = vsel %vm513, 1, 0
        %v578 = vsel %vm514, 1, 0
        %v579 = vsel %vm515, 1, 0
        %v580 = vsel %vm516, 1, 0
        %v581 = vsel %vm517, 1, 0
        %v582 = vsel %vm518, 1, 0
        %v583 = vsel %vm519, 1, 0
        %v584 = vsel %vm520, 1, 0
        %v585 = vsel %vm521, 1, 0
        %v586 = vcvt.s32.f32 %v522
        %v587 = vcvt.s32.f32 %v523
        %v588 = vcvt.s32.f32 %v524
        %v589 = vcvt.s32.f32 %v525
        %v590 = vcvt.s32.f32 %v526
        %v591 = vcvt.s32.f32 %v527
        %v592 = vcvt.s32.f32 %v528
        %v593 = vcvt.s32.f32 %v529
        %v594 = vcvt.s32.f32 %v530
        %v595 = vcvt.s32.f32 %v531
        %v596 = vcvt.s32.f32 %v532
        %v597 = vcvt.s32.f32 %v533
        %v598 = vcvt.s32.f32 %v534
        %v599 = vcvt.s32.f32 %v535
        %v600 = vcvt.s32.f32 %v536
        %v601 = vcvt.s32.f32 %v537
        %v602 = vcvt.s32.f32 %v538
        %v603 = vcvt.s32.f32 %v539
        %v604 = vcvt.s32.f32 %v540
        %v605 = vcvt.s32.f32 %v541
        %v606 = vcvt.s32.f32 %v542
        %v607 = vcvt.s32.f32 %v543
        %v608 = vcvt.s32.f32 %v544
        %v609 = vcvt.s32.f32 %v545
        %v610 = vcvt.s32.f32 %v546
        %v611 = vcvt.s32.f32 %v547
        %v612 = vcvt.s32.f32 %v548
        %v613 = vcvt.s32.f32 %v549
        %v614 = vcvt.s32.f32 %v550
        %v615 = vcvt.s32.f32 %v551
        %v616 = vcvt.s32.f32 %v552
        %v617 = vcvt.s32.f32 %v553
        %v618 = vcvt.s32.f32 %v554
        %v619 = vcvt.s32.f32 %v555
        %v620 = vcvt.s32.f32 %v556
        %v621 = vcvt.s32.f32 %v557
        %v622 = vcvt.s32.f32 %v558
        %v623 = vcvt.s32.f32 %v559
        %v624 = vcvt.s32.f32 %v560
        %v625 = vcvt.s32.f32 %v561
        %v626 = vcvt.s32.f32 %v562
        %v627 = vcvt.s32.f32 %v563
        %v628 = vcvt.s32.f32 %v564
        %v629 = vcvt.s32.f32 %v565
        %v630 = vcvt.s32.f32 %v566
        %v631 = vcvt.s32.f32 %v567
        %v632 = vcvt.s32.f32 %v568
        %v633 = vcvt.s32.f32 %v569
        %v634 = vcvt.s32.f32 %v570
        %v635 = vcvt.s32.f32 %v571
        %v636 = vcvt.s32.f32 %v572
        %v637 = vcvt.s32.f32 %v573
        %v638 = vcvt.s32.f32 %v574
        %v639 = vcvt.s32.f32 %v575
        %v640 = vcvt.s32.f32 %v576
        %v641 = vcvt.s32.f32 %v577
        %v642 = vcvt.s32.f32 %v578
        %v643 = vcvt.s32.f32 %v579
        %v644 = vcvt.s32.f32 %v580
        %v645 = vcvt.s32.f32 %v581
        %v646 = vcvt.s32.f32 %v582
        %v647 = vcvt.s32.f32 %v583
        %v648 = vcvt.s32.f32 %v584
        %v649 = vcvt.s32.f32 %v585
        %v650 = vpack.c.bf16 %v590, %v586
        %v651 = vpack.c.bf16 %v591, %v587
        %v652 = vpack.c.bf16 %v592, %v588
        %v653 = vpack.c.bf16 %v593, %v589
        %v654 = vpack.c.bf16 %v598, %v594
        %v655 = vpack.c.bf16 %v599, %v595
        %v656 = vpack.c.bf16 %v600, %v596
        %v657 = vpack.c.bf16 %v601, %v597
        %v658 = vpack.c.bf16 %v606, %v602
        %v659 = vpack.c.bf16 %v607, %v603
        %v660 = vpack.c.bf16 %v608, %v604
        %v661 = vpack.c.bf16 %v609, %v605
        %v662 = vpack.c.bf16 %v614, %v610
        %v663 = vpack.c.bf16 %v615, %v611
        %v664 = vpack.c.bf16 %v616, %v612
        %v665 = vpack.c.bf16 %v617, %v613
        %v666 = vpack.c.bf16 %v622, %v618
        %v667 = vpack.c.bf16 %v623, %v619
        %v668 = vpack.c.bf16 %v624, %v620
        %v669 = vpack.c.bf16 %v625, %v621
        %v670 = vpack.c.bf16 %v630, %v626
        %v671 = vpack.c.bf16 %v631, %v627
        %v672 = vpack.c.bf16 %v632, %v628
        %v673 = vpack.c.bf16 %v633, %v629
        %v674 = vpack.c.bf16 %v638, %v634
        %v675 = vpack.c.bf16 %v639, %v635
        %v676 = vpack.c.bf16 %v640, %v636
        %v677 = vpack.c.bf16 %v641, %v637
        %v678 = vpack.c.bf16 %v646, %v642
        %v679 = vpack.c.bf16 %v647, %v643
        %v680 = vpack.c.bf16 %v648, %v644
        %v681 = vpack.c.bf16 %v649, %v645
        %682 = vmatpush.bf16.xpose.msra.mxu0 %v678
        %683 = vmatpush.bf16.xpose.msra.mxu0 %v674
        %684 = vmatpush.bf16.xpose.msra.mxu0 %v670
        %685 = vmatpush.bf16.xpose.msra.mxu0 %v666
        %686 = vmatpush.bf16.xpose.msra.mxu0 %v662
        %687 = vmatpush.bf16.xpose.msra.mxu0 %v658
        %688 = vmatpush.bf16.xpose.msra.mxu0 %v654
        %689 = vmatpush.bf16.xpose.msra.mxu0 %v650
        %690 = vmatmul.bf16.gmra.mxu0 %v430
        %v691 = vpop.f32.mrf.mxu0
        %v692 = vadd.f32 0.0, %v691
        %v693 = vpop.f32.mrf.mxu0
        %v694 = vadd.f32 0.0, %v693
        %695 = vmatmul.bf16.gmra.mxu0 %v434
        %v696 = vpop.f32.mrf.mxu0
        %v697 = vadd.f32 0.0, %v696
        %v698 = vpop.f32.mrf.mxu0
        %v699 = vadd.f32 0.0, %v698
        %700 = vmatmul.bf16.gmra.mxu0 %v438
        %v701 = vpop.f32.mrf.mxu0
        %v702 = vadd.f32 0.0, %v701
        %v703 = vpop.f32.mrf.mxu0
        %v704 = vadd.f32 0.0, %v703
        %705 = vmatmul.bf16.gmra.mxu0 %v442
        %v706 = vpop.f32.mrf.mxu0
        %v707 = vadd.f32 0.0, %v706
        %v708 = vpop.f32.mrf.mxu0
        %v709 = vadd.f32 0.0, %v708
        %710 = vdwg.mxu0
        %711 = vmatpush.bf16.xpose.msra.mxu0 %v679
        %712 = vmatpush.bf16.xpose.msra.mxu0 %v675
        %713 = vmatpush.bf16.xpose.msra.mxu0 %v671
        %714 = vmatpush.bf16.xpose.msra.mxu0 %v667
        %715 = vmatpush.bf16.xpose.msra.mxu0 %v663
        %716 = vmatpush.bf16.xpose.msra.mxu0 %v659
        %717 = vmatpush.bf16.xpose.msra.mxu0 %v655
        %718 = vmatpush.bf16.xpose.msra.mxu0 %v651
        %719 = vmatmul.bf16.gmra.mxu0 %v431
        %v720 = vpop.f32.mrf.mxu0
        %v721 = vadd.f32 %v692, %v720
        %v722 = vpop.f32.mrf.mxu0
        %v723 = vadd.f32 %v694, %v722
        %724 = vmatmul.bf16.gmra.mxu0 %v435
        %v725 = vpop.f32.mrf.mxu0
        %v726 = vadd.f32 %v697, %v725
        %v727 = vpop.f32.mrf.mxu0
        %v728 = vadd.f32 %v699, %v727
        %729 = vmatmul.bf16.gmra.mxu0 %v439
        %v730 = vpop.f32.mrf.mxu0
        %v731 = vadd.f32 %v702, %v730
        %v732 = vpop.f32.mrf.mxu0
        %v733 = vadd.f32 %v704, %v732
        %734 = vmatmul.bf16.gmra.mxu0 %v443
        %v735 = vpop.f32.mrf.mxu0
        %v736 = vadd.f32 %v707, %v735
        %v737 = vpop.f32.mrf.mxu0
        %v738 = vadd.f32 %v709, %v737
        %739 = vdwg.mxu0
        %740 = vmatpush.bf16.xpose.msra.mxu0 %v680
        %741 = vmatpush.bf16.xpose.msra.mxu0 %v676
        %742 = vmatpush.bf16.xpose.msra.mxu0 %v672
        %743 = vmatpush.bf16.xpose.msra.mxu0 %v668
        %744 = vmatpush.bf16.xpose.msra.mxu0 %v664
        %745 = vmatpush.bf16.xpose.msra.mxu0 %v660
        %746 = vmatpush.bf16.xpose.msra.mxu0 %v656
        %747 = vmatpush.bf16.xpose.msra.mxu0 %v652
        %748 = vmatmul.bf16.gmra.mxu0 %v432
        %v749 = vpop.f32.mrf.mxu0
        %v750 = vadd.f32 %v721, %v749
        %v751 = vpop.f32.mrf.mxu0
        %v752 = vadd.f32 %v723, %v751
        %753 = vmatmul.bf16.gmra.mxu0 %v436
        %v754 = vpop.f32.mrf.mxu0
        %v755 = vadd.f32 %v726, %v754
        %v756 = vpop.f32.mrf.mxu0
        %v757 = vadd.f32 %v728, %v756
        %758 = vmatmul.bf16.gmra.mxu0 %v440
        %v759 = vpop.f32.mrf.mxu0
        %v760 = vadd.f32 %v731, %v759
        %v761 = vpop.f32.mrf.mxu0
        %v762 = vadd.f32 %v733, %v761
        %763 = vmatmul.bf16.gmra.mxu0 %v444
        %v764 = vpop.f32.mrf.mxu0
        %v765 = vadd.f32 %v736, %v764
        %v766 = vpop.f32.mrf.mxu0
        %v767 = vadd.f32 %v738, %v766
        %768 = vdwg.mxu0
        %769 = vmatpush.bf16.xpose.msra.mxu0 %v681
        %770 = vmatpush.bf16.xpose.msra.mxu0 %v677
        %771 = vmatpush.bf16.xpose.msra.mxu0 %v673
        %772 = vmatpush.bf16.xpose.msra.mxu0 %v669
        %773 = vmatpush.bf16.xpose.msra.mxu0 %v665
        %774 = vmatpush.bf16.xpose.msra.mxu0 %v661
        %775 = vmatpush.bf16.xpose.msra.mxu0 %v657
        %776 = vmatpush.bf16.xpose.msra.mxu0 %v653
        %777 = vmatmul.bf16.gmra.mxu0 %v433
        %v778 = vpop.f32.mrf.mxu0
        %v779 = vadd.f32 %v750, %v778
        %v780 = vpop.f32.mrf.mxu0
        %v781 = vadd.f32 %v752, %v780
        %782 = vmatmul.bf16.gmra.mxu0 %v437
        %v783 = vpop.f32.mrf.mxu0
        %v784 = vadd.f32 %v755, %v783
        %v785 = vpop.f32.mrf.mxu0
        %v786 = vadd.f32 %v757, %v785
        %787 = vmatmul.bf16.gmra.mxu0 %v441
        %v788 = vpop.f32.mrf.mxu0
        %v789 = vadd.f32 %v760, %v788
        %v790 = vpop.f32.mrf.mxu0
        %v791 = vadd.f32 %v762, %v790
        %792 = vmatmul.bf16.gmra.mxu0 %v445
        %v793 = vpop.f32.mrf.mxu0
        %v794 = vadd.f32 %v765, %v793
        %v795 = vpop.f32.mrf.mxu0
        %v796 = vadd.f32 %v767, %v795
        %797 = vdwg.mxu0
        %v798 = vld [vmem:[#allocation3] sm:$0xff]
        %v799 = vld [vmem:[#allocation3 + $0x8] sm:$0xff]
        %v800 = vld [vmem:[#allocation3 + $0x10] sm:$0xff]
        %v801 = vld [vmem:[#allocation3 + $0x18] sm:$0xff]
        %v802 = vld [vmem:[#allocation3 + $0x20] sm:$0xff]
        %v803 = vld [vmem:[#allocation3 + $0x28] sm:$0xff]
        %v804 = vld [vmem:[#allocation3 + $0x30] sm:$0xff]
        %v805 = vld [vmem:[#allocation3 + $0x38] sm:$0xff]
        %806 = vadd.xlane.f32.xlu0 %v779
        %v807 = vpop.xlane.xlu0 %806
        %808 = vadd.xlane.f32.xlu0 %v781
        %v809 = vpop.xlane.xlu0 %808
        %810 = vadd.xlane.f32.xlu0 %v784
        %v811 = vpop.xlane.xlu0 %810
        %812 = vadd.xlane.f32.xlu0 %v786
        %v813 = vpop.xlane.xlu0 %812
        %814 = vadd.xlane.f32.xlu0 %v789
        %v815 = vpop.xlane.xlu0 %814
        %816 = vadd.xlane.f32.xlu0 %v791
        %v817 = vpop.xlane.xlu0 %816
        %818 = vadd.xlane.f32.xlu0 %v794
        %v819 = vpop.xlane.xlu0 %818
        %820 = vadd.xlane.f32.xlu0 %v796
        %v821 = vpop.xlane.xlu0 %820
        %v822 = vadd.f32 %v798, %v807
        %v823 = vadd.f32 %v799, %v809
        %v824 = vadd.f32 %v800, %v811
        %v825 = vadd.f32 %v801, %v813
        %v826 = vadd.f32 %v802, %v815
        %v827 = vadd.f32 %v803, %v817
        %v828 = vadd.f32 %v804, %v819
        %v829 = vadd.f32 %v805, %v821
        %vm830 = vcmask 7168
        %831 = vst.msk [vmem:[#allocation3] sm:$0xff] %vm830, %v822
        %832 = vst.msk [vmem:[#allocation3 + $0x8] sm:$0xff] %vm830, %v823
        %833 = vst.msk [vmem:[#allocation3 + $0x10] sm:$0xff] %vm830, %v824
        %834 = vst.msk [vmem:[#allocation3 + $0x18] sm:$0xff] %vm830, %v825
        %835 = vst.msk [vmem:[#allocation3 + $0x20] sm:$0xff] %vm830, %v826
        %836 = vst.msk [vmem:[#allocation3 + $0x28] sm:$0xff] %vm830, %v827
        %837 = vst.msk [vmem:[#allocation3 + $0x30] sm:$0xff] %vm830, %v828
        %838 = vst.msk [vmem:[#allocation3 + $0x38] sm:$0xff] %vm830, %v829
        %v839 = vld [vmem:[#allocation2] sm:$0xff]
        %v840 = vld [vmem:[#allocation2 + $0x8] sm:$0xff]
        %v841 = vld [vmem:[#allocation2 + $0x10] sm:$0xff]
        %v842 = vld [vmem:[#allocation2 + $0x18] sm:$0xff]
        %v843 = vld [vmem:[#allocation2 + $0x20] sm:$0xff]
        %v844 = vld [vmem:[#allocation2 + $0x28] sm:$0xff]
        %v845 = vld [vmem:[#allocation2 + $0x30] sm:$0xff]
        %v846 = vld [vmem:[#allocation2 + $0x38] sm:$0xff]
        %v847 = vpack.c.bf16 %v781, %v779
        %v848 = vpack.c.bf16 %v786, %v784
        %v849 = vpack.c.bf16 %v791, %v789
        %v850 = vpack.c.bf16 %v796, %v794
        %v851 = vld [vmem:[#allocation9] sm:$0xf]
        %v852 = vld [vmem:[#allocation9 + $0x4] sm:$0xf]
        %v853 = vld [vmem:[#allocation9 + $0x8] sm:$0xf]
        %v854 = vld [vmem:[#allocation9 + $0xc] sm:$0xf]
        %v855 = vld [vmem:[#allocation9 + $0x10] sm:$0xf]
        %v856 = vld [vmem:[#allocation9 + $0x14] sm:$0xf]
        %v857 = vld [vmem:[#allocation9 + $0x18] sm:$0xf]
        %v858 = vld [vmem:[#allocation9 + $0x1c] sm:$0xf]
        %v859 = vld [vmem:[#allocation9 + $0x20] sm:$0xf]
        %v860 = vld [vmem:[#allocation9 + $0x24] sm:$0xf]
        %v861 = vld [vmem:[#allocation9 + $0x28] sm:$0xf]
        %v862 = vld [vmem:[#allocation9 + $0x2c] sm:$0xf]
        %v863 = vld [vmem:[#allocation9 + $0x30] sm:$0xf]
        %v864 = vld [vmem:[#allocation9 + $0x34] sm:$0xf]
        %v865 = vld [vmem:[#allocation9 + $0x38] sm:$0xf]
        %v866 = vld [vmem:[#allocation9 + $0x3c] sm:$0xf]
        %v883 = vunpack.c.l.b16 %v851
        %v884 = vunpack.c.l.b16 %v852
        %v885 = vunpack.c.l.b16 %v853
        %v886 = vunpack.c.l.b16 %v854
        %v887 = vunpack.c.l.b16 %v855
        %v888 = vunpack.c.l.b16 %v856
        %v889 = vunpack.c.l.b16 %v857
        %v890 = vunpack.c.l.b16 %v858
        %v891 = vunpack.c.l.b16 %v859
        %v892 = vunpack.c.l.b16 %v860
        %v893 = vunpack.c.l.b16 %v861
        %v894 = vunpack.c.l.b16 %v862
        %v895 = vunpack.c.l.b16 %v863
        %v896 = vunpack.c.l.b16 %v864
        %v897 = vunpack.c.l.b16 %v865
        %v898 = vunpack.c.l.b16 %v866
        %v899 = vpack.c.b16 %v884, %v883
        %v900 = vpack.c.b16 %v886, %v885
        %v901 = vpack.c.b16 %v888, %v887
        %v902 = vpack.c.b16 %v890, %v889
        %v903 = vpack.c.b16 %v892, %v891
        %v904 = vpack.c.b16 %v894, %v893
        %v905 = vpack.c.b16 %v896, %v895
        %v906 = vpack.c.b16 %v898, %v897
        %915 = vmatpush.bf16.msra.mxu0 %v906
        %916 = vmatpush.bf16.msra.mxu0 %v905
        %917 = vmatpush.bf16.msra.mxu0 %v904
        %918 = vmatpush.bf16.msra.mxu0 %v903
        %919 = vmatpush.bf16.msra.mxu0 %v902
        %920 = vmatpush.bf16.msra.mxu0 %v901
        %921 = vmatpush.bf16.msra.mxu0 %v900
        %922 = vmatpush.bf16.msra.mxu0 %v899
        %923 = vmatmul.bf16.gmra.mxu0 %v847
        %v924 = vpop.f32.mrf.mxu0
        %v925 = vadd.f32 0.0, %v924
        %v926 = vpop.f32.mrf.mxu0
        %v927 = vadd.f32 0.0, %v926
        %928 = vmatmul.bf16.gmra.mxu0 %v848
        %v929 = vpop.f32.mrf.mxu0
        %v930 = vadd.f32 0.0, %v929
        %v931 = vpop.f32.mrf.mxu0
        %v932 = vadd.f32 0.0, %v931
        %933 = vmatmul.bf16.gmra.mxu0 %v849
        %v934 = vpop.f32.mrf.mxu0
        %v935 = vadd.f32 0.0, %v934
        %v936 = vpop.f32.mrf.mxu0
        %v937 = vadd.f32 0.0, %v936
        %938 = vmatmul.bf16.gmra.mxu0 %v850
        %v939 = vpop.f32.mrf.mxu0
        %v940 = vadd.f32 0.0, %v939
        %v941 = vpop.f32.mrf.mxu0
        %v942 = vadd.f32 0.0, %v941
        %943 = vdwg.mxu0
        %v944 = vadd.f32 %v839, %v925
        %v945 = vadd.f32 %v840, %v927
        %v946 = vadd.f32 %v841, %v930
        %v947 = vadd.f32 %v842, %v932
        %v948 = vadd.f32 %v843, %v935
        %v949 = vadd.f32 %v844, %v937
        %v950 = vadd.f32 %v845, %v940
        %v951 = vadd.f32 %v846, %v942
        %952 = vst [vmem:[#allocation2] sm:$0xff] %v944
        %953 = vst [vmem:[#allocation2 + $0x8] sm:$0xff] %v945
        %954 = vst [vmem:[#allocation2 + $0x10] sm:$0xff] %v946
        %955 = vst [vmem:[#allocation2 + $0x18] sm:$0xff] %v947
        %956 = vst [vmem:[#allocation2 + $0x20] sm:$0xff] %v948
        %957 = vst [vmem:[#allocation2 + $0x28] sm:$0xff] %v949
        %958 = vst [vmem:[#allocation2 + $0x30] sm:$0xff] %v950
        %959 = vst [vmem:[#allocation2 + $0x38] sm:$0xff] %v951
        // Predicated region
        $region61: #{tpu_custom_call.1} parent=39 // pred_check
          %p960 = pneg %p295
        $region62: #{tpu_custom_call.1} parent=39 // pred_check_branch
          %962 = sbr.rel (%p960) target = $region64
        $region63: #{tpu_custom_call.1} parent=39 // pred_region
          %v963 = vld [vmem:[#allocation3] sm:$0xff]
          %v964 = vld [vmem:[#allocation3 + $0x8] sm:$0xff]
          %v965 = vld [vmem:[#allocation3 + $0x10] sm:$0xff]
          %v966 = vld [vmem:[#allocation3 + $0x18] sm:$0xff]
          %v967 = vld [vmem:[#allocation3 + $0x20] sm:$0xff]
          %v968 = vld [vmem:[#allocation3 + $0x28] sm:$0xff]
          %v969 = vld [vmem:[#allocation3 + $0x30] sm:$0xff]
          %v970 = vld [vmem:[#allocation3 + $0x38] sm:$0xff]
          %v971 = vmax.f32 %v963, 1.0
          %v972 = vmax.f32 %v964, 1.0
          %v973 = vmax.f32 %v965, 1.0
          %v974 = vmax.f32 %v966, 1.0
          %v975 = vmax.f32 %v967, 1.0
          %v976 = vmax.f32 %v968, 1.0
          %v977 = vmax.f32 %v969, 1.0
          %v978 = vmax.f32 %v970, 1.0
          %v979 = vrcp.pop %v971
          %v980 = vrcp.pop %v972
          %v981 = vrcp.pop %v973
          %v982 = vrcp.pop %v974
          %v983 = vrcp.pop %v975
          %v984 = vrcp.pop %v976
          %v985 = vrcp.pop %v977
          %v986 = vrcp.pop %v978
          %v987 = vld [vmem:[#allocation2] sm:$0xff]
          %v988 = vld [vmem:[#allocation2 + $0x8] sm:$0xff]
          %v989 = vld [vmem:[#allocation2 + $0x10] sm:$0xff]
          %v990 = vld [vmem:[#allocation2 + $0x18] sm:$0xff]
          %v991 = vld [vmem:[#allocation2 + $0x20] sm:$0xff]
          %v992 = vld [vmem:[#allocation2 + $0x28] sm:$0xff]
          %v993 = vld [vmem:[#allocation2 + $0x30] sm:$0xff]
          %v994 = vld [vmem:[#allocation2 + $0x38] sm:$0xff]
          %996 = vset.pattern.permute.xlu0 0
          %997 = vperm.xlu0 %996, %v979
          %v998 = vpop.permute.xlu0 %997
          %1001 = vset.pattern.permute.xlu0 0
          %1002 = vperm.xlu0 %1001, %v980
          %v1003 = vpop.permute.xlu0 %1002
          %1006 = vset.pattern.permute.xlu0 0
          %1007 = vperm.xlu0 %1006, %v981
          %v1008 = vpop.permute.xlu0 %1007
          %1011 = vset.pattern.permute.xlu0 0
          %1012 = vperm.xlu0 %1011, %v982
          %v1013 = vpop.permute.xlu0 %1012
          %1016 = vset.pattern.permute.xlu0 0
          %1017 = vperm.xlu0 %1016, %v983
          %v1018 = vpop.permute.xlu0 %1017
          %1021 = vset.pattern.permute.xlu0 0
          %1022 = vperm.xlu0 %1021, %v984
          %v1023 = vpop.permute.xlu0 %1022
          %1026 = vset.pattern.permute.xlu0 0
          %1027 = vperm.xlu0 %1026, %v985
          %v1028 = vpop.permute.xlu0 %1027
          %1031 = vset.pattern.permute.xlu0 0
          %1032 = vperm.xlu0 %1031, %v986
          %v1033 = vpop.permute.xlu0 %1032
          %v1035 = vmul.f32 %v987, %v998
          %v1036 = vmul.f32 %v988, %v1003
          %v1037 = vmul.f32 %v989, %v1008
          %v1038 = vmul.f32 %v990, %v1013
          %v1039 = vmul.f32 %v991, %v1018
          %v1040 = vmul.f32 %v992, %v1023
          %v1041 = vmul.f32 %v993, %v1028
          %v1042 = vmul.f32 %v994, %v1033
          %v1043 = vpack.c.bf16 %v1035, %v1035
          %v1044 = vpack.c.bf16 %v1036, %v1036
          %v1045 = vpack.c.bf16 %v1037, %v1037
          %v1046 = vpack.c.bf16 %v1038, %v1038
          %v1047 = vpack.c.bf16 %v1039, %v1039
          %v1048 = vpack.c.bf16 %v1040, %v1040
          %v1049 = vpack.c.bf16 %v1041, %v1041
          %v1050 = vpack.c.bf16 %v1042, %v1042
          %s1051 = sshra.s32 %s318, 3
          %s1052 = sand.u32 %s318, 7
          %s1053 = smul.addr %s1051, 4
          %s1054 = scalar_lea.vmem [#allocation9], %s1053
          %v1055 = vld [vmem:[%s1054] sm:$0xf]
          %v1056 = vld [vmem:[%s1054 + $0x4] sm:$0xf]
          %v1057 = vld [vmem:[%s1054 + $0x8] sm:$0xf]
          %v1058 = vld [vmem:[%s1054 + $0xc] sm:$0xf]
          %v1059 = vld [vmem:[%s1054 + $0x10] sm:$0xf]
          %v1060 = vld [vmem:[%s1054 + $0x14] sm:$0xf]
          %v1061 = vld [vmem:[%s1054 + $0x18] sm:$0xf]
          %v1062 = vld [vmem:[%s1054 + $0x1c] sm:$0xf]
          %v1071 = vunpack.c.l.b16 %v1043
          %v1072 = vunpack.c.l.b16 %v1044
          %v1073 = vunpack.c.l.b16 %v1045
          %v1074 = vunpack.c.l.b16 %v1046
          %v1075 = vunpack.c.l.b16 %v1047
          %v1076 = vunpack.c.l.b16 %v1048
          %v1077 = vunpack.c.l.b16 %v1049
          %v1078 = vunpack.c.l.b16 %v1050
          %v1079 = vpack.c.b16 %v1072, %v1071
          %v1080 = vpack.c.b16 %v1074, %v1073
          %v1081 = vpack.c.b16 %v1076, %v1075
          %v1082 = vpack.c.b16 %v1078, %v1077
          %v1095 = vunpack.c.l.b16 %v1055
          %v1096 = vunpack.c.l.b16 %v1056
          %v1097 = vunpack.c.l.b16 %v1057
          %v1098 = vunpack.c.l.b16 %v1058
          %v1099 = vunpack.c.l.b16 %v1059
          %v1100 = vunpack.c.l.b16 %v1060
          %v1101 = vunpack.c.l.b16 %v1061
          %v1102 = vunpack.c.l.b16 %v1062
          %v1103 = vpack.c.b16 %v1096, %v1095
          %v1104 = vpack.c.b16 %v1098, %v1097
          %v1105 = vpack.c.b16 %v1100, %v1099
          %v1106 = vpack.c.b16 %v1102, %v1101
          %v1111 = vld [vmem:[#allocation10] sm:$0xf]
          %v1112 = vld [vmem:[#allocation10 + $0x4] sm:$0xf]
          %v1113 = vld [vmem:[#allocation10 + $0x8] sm:$0xf]
          %v1114 = vld [vmem:[#allocation10 + $0xc] sm:$0xf]
          %v1115 = vld [vmem:[#allocation10 + $0x10] sm:$0xf]
          %v1116 = vld [vmem:[#allocation10 + $0x14] sm:$0xf]
          %v1117 = vld [vmem:[#allocation10 + $0x18] sm:$0xf]
          %v1118 = vld [vmem:[#allocation10 + $0x1c] sm:$0xf]
          %v1119 = vld [vmem:[#allocation10 + $0x20] sm:$0xf]
          %v1120 = vld [vmem:[#allocation10 + $0x24] sm:$0xf]
          %v1121 = vld [vmem:[#allocation10 + $0x28] sm:$0xf]
          %v1122 = vld [vmem:[#allocation10 + $0x2c] sm:$0xf]
          %v1123 = vld [vmem:[#allocation10 + $0x30] sm:$0xf]
          %v1124 = vld [vmem:[#allocation10 + $0x34] sm:$0xf]
          %v1125 = vld [vmem:[#allocation10 + $0x38] sm:$0xf]
          %v1126 = vld [vmem:[#allocation10 + $0x3c] sm:$0xf]
          %v1127 = vld [vmem:[#allocation10 + $0x40] sm:$0xf]
          %v1128 = vld [vmem:[#allocation10 + $0x44] sm:$0xf]
          %v1129 = vld [vmem:[#allocation10 + $0x48] sm:$0xf]
          %v1130 = vld [vmem:[#allocation10 + $0x4c] sm:$0xf]
          %v1131 = vld [vmem:[#allocation10 + $0x50] sm:$0xf]
          %v1132 = vld [vmem:[#allocation10 + $0x54] sm:$0xf]
          %v1133 = vld [vmem:[#allocation10 + $0x58] sm:$0xf]
          %v1134 = vld [vmem:[#allocation10 + $0x5c] sm:$0xf]
          %v1135 = vld [vmem:[#allocation10 + $0x60] sm:$0xf]
          %v1136 = vld [vmem:[#allocation10 + $0x64] sm:$0xf]
          %v1137 = vld [vmem:[#allocation10 + $0x68] sm:$0xf]
          %v1138 = vld [vmem:[#allocation10 + $0x6c] sm:$0xf]
          %v1139 = vld [vmem:[#allocation10 + $0x70] sm:$0xf]
          %v1140 = vld [vmem:[#allocation10 + $0x74] sm:$0xf]
          %v1141 = vld [vmem:[#allocation10 + $0x78] sm:$0xf]
          %v1142 = vld [vmem:[#allocation10 + $0x7c] sm:$0xf]
          %v1143 = vld [vmem:[%s4] sm:$0x1]
          %v1145 = vperm.slane %v1143, 0
          %v1179 = vunpack.c.l.b16 %v1111
          %v1180 = vunpack.c.l.b16 %v1112
          %v1181 = vunpack.c.l.b16 %v1113
          %v1182 = vunpack.c.l.b16 %v1114
          %v1183 = vunpack.c.l.b16 %v1115
          %v1184 = vunpack.c.l.b16 %v1116
          %v1185 = vunpack.c.l.b16 %v1117
          %v1186 = vunpack.c.l.b16 %v1118
          %v1187 = vunpack.c.l.b16 %v1119
          %v1188 = vunpack.c.l.b16 %v1120
          %v1189 = vunpack.c.l.b16 %v1121
          %v1190 = vunpack.c.l.b16 %v1122
          %v1191 = vunpack.c.l.b16 %v1123
          %v1192 = vunpack.c.l.b16 %v1124
          %v1193 = vunpack.c.l.b16 %v1125
          %v1194 = vunpack.c.l.b16 %v1126
          %v1195 = vunpack.c.l.b16 %v1127
          %v1196 = vunpack.c.l.b16 %v1128
          %v1197 = vunpack.c.l.b16 %v1129
          %v1198 = vunpack.c.l.b16 %v1130
          %v1199 = vunpack.c.l.b16 %v1131
          %v1200 = vunpack.c.l.b16 %v1132
          %v1201 = vunpack.c.l.b16 %v1133
          %v1202 = vunpack.c.l.b16 %v1134
          %v1203 = vunpack.c.l.b16 %v1135
          %v1204 = vunpack.c.l.b16 %v1136
          %v1205 = vunpack.c.l.b16 %v1137
          %v1206 = vunpack.c.l.b16 %v1138
          %v1207 = vunpack.c.l.b16 %v1139
          %v1208 = vunpack.c.l.b16 %v1140
          %v1209 = vunpack.c.l.b16 %v1141
          %v1210 = vunpack.c.l.b16 %v1142
          %v1211 = vpack.c.b16 %v1180, %v1179
          %v1212 = vpack.c.b16 %v1182, %v1181
          %v1213 = vpack.c.b16 %v1184, %v1183
          %v1214 = vpack.c.b16 %v1186, %v1185
          %v1215 = vpack.c.b16 %v1188, %v1187
          %v1216 = vpack.c.b16 %v1190, %v1189
          %v1217 = vpack.c.b16 %v1192, %v1191
          %v1218 = vpack.c.b16 %v1194, %v1193
          %v1219 = vpack.c.b16 %v1196, %v1195
          %v1220 = vpack.c.b16 %v1198, %v1197
          %v1221 = vpack.c.b16 %v1200, %v1199
          %v1222 = vpack.c.b16 %v1202, %v1201
          %v1223 = vpack.c.b16 %v1204, %v1203
          %v1224 = vpack.c.b16 %v1206, %v1205
          %v1225 = vpack.c.b16 %v1208, %v1207
          %v1226 = vpack.c.b16 %v1210, %v1209
          %1243 = vmatpush.bf16.msra.mxu0 %v1218
          %1244 = vmatpush.bf16.msra.mxu0 %v1217
          %1245 = vmatpush.bf16.msra.mxu0 %v1216
          %1246 = vmatpush.bf16.msra.mxu0 %v1215
          %1247 = vmatpush.bf16.msra.mxu0 %v1214
          %1248 = vmatpush.bf16.msra.mxu0 %v1213
          %1249 = vmatpush.bf16.msra.mxu0 %v1212
          %1250 = vmatpush.bf16.msra.mxu0 %v1211
          %1251 = vmatmul.bf16.gmra.mxu0 %v1079
          %v1252 = vpop.f32.mrf.mxu0
          %v1253 = vadd.f32 %v1145, %v1252
          %v1254 = vpop.f32.mrf.mxu0
          %v1255 = vadd.f32 %v1145, %v1254
          %1256 = vmatmul.bf16.gmra.mxu0 %v1080
          %v1257 = vpop.f32.mrf.mxu0
          %v1258 = vadd.f32 %v1145, %v1257
          %v1259 = vpop.f32.mrf.mxu0
          %v1260 = vadd.f32 %v1145, %v1259
          %1261 = vmatmul.bf16.gmra.mxu0 %v1081
          %v1262 = vpop.f32.mrf.mxu0
          %v1263 = vadd.f32 %v1145, %v1262
          %v1264 = vpop.f32.mrf.mxu0
          %v1265 = vadd.f32 %v1145, %v1264
          %1266 = vmatmul.bf16.gmra.mxu0 %v1082
          %v1267 = vpop.f32.mrf.mxu0
          %v1268 = vadd.f32 %v1145, %v1267
          %v1269 = vpop.f32.mrf.mxu0
          %v1270 = vadd.f32 %v1145, %v1269
          %1271 = vdwg.mxu0
          %1272 = vmatpush.bf16.msra.mxu0 %v1226
          %1273 = vmatpush.bf16.msra.mxu0 %v1225
          %1274 = vmatpush.bf16.msra.mxu0 %v1224
          %1275 = vmatpush.bf16.msra.mxu0 %v1223
          %1276 = vmatpush.bf16.msra.mxu0 %v1222
          %1277 = vmatpush.bf16.msra.mxu0 %v1221
          %1278 = vmatpush.bf16.msra.mxu0 %v1220
          %1279 = vmatpush.bf16.msra.mxu0 %v1219
          %1280 = vmatmul.bf16.gmra.mxu0 %v1103
          %v1281 = vpop.f32.mrf.mxu0
          %v1282 = vadd.f32 %v1253, %v1281
          %v1283 = vpop.f32.mrf.mxu0
          %v1284 = vadd.f32 %v1255, %v1283
          %1285 = vmatmul.bf16.gmra.mxu0 %v1104
          %v1286 = vpop.f32.mrf.mxu0
          %v1287 = vadd.f32 %v1258, %v1286
          %v1288 = vpop.f32.mrf.mxu0
          %v1289 = vadd.f32 %v1260, %v1288
          %1290 = vmatmul.bf16.gmra.mxu0 %v1105
          %v1291 = vpop.f32.mrf.mxu0
          %v1292 = vadd.f32 %v1263, %v1291
          %v1293 = vpop.f32.mrf.mxu0
          %v1294 = vadd.f32 %v1265, %v1293
          %1295 = vmatmul.bf16.gmra.mxu0 %v1106
          %v1296 = vpop.f32.mrf.mxu0
          %v1297 = vadd.f32 %v1268, %v1296
          %v1298 = vpop.f32.mrf.mxu0
          %v1299 = vadd.f32 %v1270, %v1298
          %1300 = vdwg.mxu0
          %1301 = vst [vmem:[%s291] sm:$0xff] %v1282
          %1302 = vst [vmem:[%s291 + $0x8] sm:$0xff] %v1284
          %1303 = vst [vmem:[%s291 + $0x10] sm:$0xff] %v1287
          %1304 = vst [vmem:[%s291 + $0x18] sm:$0xff] %v1289
          %1305 = vst [vmem:[%s291 + $0x20] sm:$0xff] %v1292
          %1306 = vst [vmem:[%s291 + $0x28] sm:$0xff] %v1294
          %1307 = vst [vmem:[%s291 + $0x30] sm:$0xff] %v1297
          %1308 = vst [vmem:[%s291 + $0x38] sm:$0xff] %v1299
        $region64: #{tpu_custom_call.1} parent=39 // pred_fallthru
          _
        %s1309 = sand.u32 %s157, 1
        %s1310 = scalar_lea.sflag [#allocation6], %s1309
        %s1311 = sand.u32 %s157, 1
        %s1312 = smul.addr %s1311, 64
        %s1313 = scalar_lea.vmem [#allocation12], %s1312
        // Predicated region
        $region65: #{tpu_custom_call.1} parent=39 // pred_check
          %p1314 = pneg %p167
        $region66: #{tpu_custom_call.1} parent=39 // pred_check_branch
          %1316 = sbr.rel (%p1314) target = $region68
        $region67: #{tpu_custom_call.1} parent=39 // pred_region
          %s1317 = smul.u32 8, %s26
          %1319 = vsyncadd %s1310, 0
          %s1320 = smul.addr %s1317, 8
          %s1321 = scalar_lea.hbm %s5, %s1320
          %s1322 = sshll.u32 %s1313, 4
          %s1323 = int_to_ptr.vmem [resolvable:$true] %s1322
          %s1324 = sshll.u32 %s1321, 4
          %s1325 = int_to_ptr.hbm [resolvable:$true] %s1324
          %1330 = dma.vmem_to_hbm [thread:$0]  %s1323, 1024, %s1325, %s1310, 128, 128, 8
        $region68: #{tpu_custom_call.1} parent=39 // pred_fallthru
          _
      $region40: #{tpu_custom_call.1} parent=5 // pred_fallthru
        _
      %p1331 = scmp.le.s32.totalorder 2, %s17
      // Predicated region
      $region69: #{tpu_custom_call.1} parent=5 // pred_check
        %p1332 = pneg %p1331
      $region70: #{tpu_custom_call.1} parent=5 // pred_check_branch
        %1334 = sbr.rel (%p1332) target = $region72
      $region71: #{tpu_custom_call.1} parent=5 // pred_region
        %s1335 = ssub.s32 %s17, 2
        // Predicated region
        $region73: #{tpu_custom_call.1} parent=71 // pred_check
          %p1336 = pneg %p173
        $region74: #{tpu_custom_call.1} parent=71 // pred_check_branch
          %1338 = sbr.rel (%p1336) target = $region76
        $region75: #{tpu_custom_call.1} parent=71 // pred_region
          %s1339 = sand.u32 %s158, 1
          %s1340 = scalar_lea.sflag [#allocation6], %s1339
          %s1341 = sand.u32 %s158, 1
          %s1342 = smul.addr %s1341, 64
          %s1343 = scalar_lea.vmem [#allocation12], %s1342
          %1345 = dma.done %s1340, 1024
        $region76: #{tpu_custom_call.1} parent=71 // pred_fallthru
          _
      $region72: #{tpu_custom_call.1} parent=5 // pred_fallthru
        _
    $region6: #{tpu_custom_call.1} parent=1 // loop_footer
      %s21 = sadd.s32 1, %s17
    $region7: #{tpu_custom_call.1} parent=1 // loop_footer_branch
      %16 = sbr.rel target = $region3
    $region8: #{tpu_custom_call.1} parent=1 // loop_exit
      _
    %1346 = vsyncpa [#allocation5], 1
    %s1347 = scalar_lea.sflag [#allocation5], 1
    %1348 = vsyncpa %s1347, 1
    %1349 = vsyncpa [#allocation8], 1
    %1350 = vsyncpa [#allocation11], 1
    %1351 = vsyncpa [#allocation6], 1
    %s1352 = scalar_lea.sflag [#allocation6], 1
    %1353 = vsyncpa %s1352, 1

</llo_original>
